<compile_context>
chip_gen: v7x
topology: tpu7x:2x2x1
jax: 0.10.0
libtpu: 0.0.40
codegen_flags: <defaults>
</compile_context>

<pallas_src>
import jax
import jax.numpy as jnp
import numpy as np
from jax.experimental import pallas as pl
from jax.experimental.pallas import tpu as pltpu


def _rup(n, m=8):
    return ((n + m - 1) // m) * m


# ---------------------------------------------------------------------------
# Host-side constant builders (0/1 selection matrices & boundary masks).
# These are static given the layer shapes and are loaded into VMEM once
# (constant index_map), then reused for every image in the grid.
# ---------------------------------------------------------------------------
def _tap_masks(H, W):
    """(9, H*W) 0/1 masks: mask[k, y*W+x] = 1 iff input (y+dy, x+dx) in-bounds."""
    m = np.zeros((9, H * W), np.float32)
    k = 0
    for dy in (-1, 0, 1):
        for dx in (-1, 0, 1):
            yy, xx = np.meshgrid(np.arange(H), np.arange(W), indexing="ij")
            ok = (yy + dy >= 0) & (yy + dy < H) & (xx + dx >= 0) & (xx + dx < W)
            m[k] = ok.reshape(-1).astype(np.float32)
            k += 1
    return jnp.asarray(m)


def _pool_select(H, W):
    """(H*W, Ho*Wo) 0/1 matrix compacting the 2x2-max values (even y/x sites)."""
    Ho, Wo = H // 2, W // 2
    s = np.zeros((H * W, Ho * Wo), np.float32)
    for yo in range(Ho):
        for xo in range(Wo):
            s[2 * yo * W + 2 * xo, yo * Wo + xo] = 1.0
    return jnp.asarray(s)


def _upsample_select(H, W):
    """(H*W, 4*H*W) 0/1 matrix implementing nearest-neighbour 2x upsampling."""
    H2, W2 = 2 * H, 2 * W
    u = np.zeros((H * W, H2 * W2), np.float32)
    for y2 in range(H2):
        for x2 in range(W2):
            u[(y2 // 2) * W + x2 // 2, y2 * W2 + x2] = 1.0
    return jnp.asarray(u)


def _prep_w(w, cin_p, cout_p):
    """(Cout,Cin,3,3) torch conv weight -> (Cout_p, 9*Cin_p), tap-major columns."""
    cout, cin = w.shape[0], w.shape[1]
    wt = jnp.transpose(w, (0, 2, 3, 1)).astype(jnp.float32)   # (cout, kh, kw, cin)
    wp = jnp.zeros((cout_p, 3, 3, cin_p), jnp.float32)
    wp = wp.at[:cout, :, :, :cin].set(wt)
    return wp.reshape(cout_p, 9 * cin_p)


def _prep_b(b, cout_p):
    cout = b.shape[0]
    return jnp.zeros((cout_p, 1), jnp.float32).at[:cout, 0].set(
        b.astype(jnp.float32))


# ---------------------------------------------------------------------------
# In-kernel helpers
# ---------------------------------------------------------------------------
def _lane_shift(x, s):
    """y[..., p] = x[..., (p + s) % n]: circular shift along the lane axis."""
    n = x.shape[-1]
    s = s % n
    if s == 0:
        return x
    return jnp.concatenate([x[:, s:], x[:, :s]], axis=1)


def _conv3x3(x, wflat, bias, masks, H, W):
    """x:(Cin_p, H*W), wflat:(Cout_p, 9*Cin_p) -> (Cout_p, H*W). One MXU dot."""
    taps = []
    k = 0
    for dy in (-1, 0, 1):
        for dx in (-1, 0, 1):
            t = _lane_shift(x, dy * W + dx)
            if dy != 0 or dx != 0:
                t = t * masks[k:k + 1, :]          # zero the padding taps
            taps.append(t)
            k += 1
    # Channels are padded to multiples of 8 -> sublane-aligned concatenation.
    im2col = jnp.concatenate(taps, axis=0)         # (9*Cin_p, H*W)
    return jnp.dot(wflat, im2col, preferred_element_type=jnp.float32) + bias


def _make_cae_kernel(enc_hw, dec_hw, c_out):
    n_dec = len(dec_hw)

    def kernel(*refs):
        x_ref, o_ref, prm = refs[0], refs[-1], refs[1:-1]
        x = x_ref[0]                                          # (Cin_p, H0*W0)
        i = 0
        # --- encoder: conv3x3(p=1) + ReLU + maxpool(2,2) --------------------
        for (H, W) in enc_hw:
            w, b, m, s = (prm[i][...], prm[i + 1][...],
                          prm[i + 2][...], prm[i + 3][...])
            i += 4
            y = jnp.maximum(_conv3x3(x, w, b, m, H, W), 0.0)
            y = jnp.maximum(y, _lane_shift(y, 1))             # max over x,x+1
            y = jnp.maximum(y, _lane_shift(y, W))             # max over y,y+1
            # Compact the 2x2-max values (even sites) on the idle MXU.
            x = jnp.dot(y, s, preferred_element_type=jnp.float32)
        # --- decoder: upsample(nearest,2x) + conv3x3(p=1) + act -------------
        for li, (H, W) in enumerate(dec_hw):
            u, w, b, m = (prm[i][...], prm[i + 1][...],
                          prm[i + 2][...], prm[i + 3][...])
            i += 4
            x = jnp.dot(x, u, preferred_element_type=jnp.float32)   # upsample
            z = _conv3x3(x, w, b, m, H, W)
            if li == n_dec - 1:
                # sigmoid(z) = 0.5*(tanh(z/2)+1): single EUP transcendental.
                x = 0.5 * (jnp.tanh(0.5 * z[:c_out, :]) + 1.0)
            else:
                x = jnp.maximum(z, 0.0)
        o_ref[0] = x

    return kernel


# ---------------------------------------------------------------------------
# ConvAutoencoder forward (stride=1, padding=1): one fused pallas_call.
# ---------------------------------------------------------------------------
def conv_autoencoder_forward(x_nchw, params):
    N, C0, H0, W0 = x_nchw.shape
    c_in_p = _rup(C0)

    # Channel-major flat input, channel-padded to a multiple of 8 sublanes.
    x = x_nchw.reshape(N, C0, H0 * W0).astype(jnp.float32)
    if c_in_p != C0:
        x = jnp.pad(x, ((0, 0), (0, c_in_p - C0), (0, 0)))

    operands = [x]
    in_specs = [pl.BlockSpec((1, c_in_p, H0 * W0), lambda n: (n, 0, 0))]

    def add_const(arr):                       # whole-array block, fetched once
        operands.append(arr)
        in_specs.append(pl.BlockSpec(arr.shape, lambda n: (0, 0)))

    enc_hw, dec_hw = [], []
    H, W, cin_p = H0, W0, c_in_p
    for (w, b) in params["enc"]:
        assert H % 2 == 0 and W % 2 == 0
        cout_p = _rup(w.shape[0])
        add_const(_prep_w(w, cin_p, cout_p))
        add_const(_prep_b(b, cout_p))
        add_const(_tap_masks(H, W))
        add_const(_pool_select(H, W))
        enc_hw.append((H, W))
        H, W, cin_p = H // 2, W // 2, cout_p
    for (w, b) in params["dec"]:
        cout_p = _rup(w.shape[0])
        add_const(_upsample_select(H, W))
        H, W = 2 * H, 2 * W
        add_const(_prep_w(w, cin_p, cout_p))
        add_const(_prep_b(b, cout_p))
        add_const(_tap_masks(H, W))
        dec_hw.append((H, W))
        cin_p = cout_p
    c_out = params["dec"][-1][0].shape[0]

    kernel = _make_cae_kernel(enc_hw, dec_hw, c_out)
    out = pl.pallas_call(
        kernel,
        out_shape=jax.ShapeDtypeStruct((N, c_out, H * W), jnp.float32),
        grid=(N,),
        in_specs=in_specs,
        out_specs=pl.BlockSpec((1, c_out, H * W), lambda n: (n, 0, 0)),
        compiler_params=pltpu.CompilerParams(
            dimension_semantics=("parallel",)),   # no scratch state: v7x-safe
    )(*operands)
    # TODO(synk): for large images, tile the grid over H-row strips with a
    # 1-row halo and set vmem_limit_bytes instead of whole-plane blocks.
    return out.reshape(N, c_out, H, W)           # already channel-major = NCHW


# ---------------------------------------------------------------------------
# Deterministic parameter init (shapes match nn.Conv2d(cin, cout, 3))
# ---------------------------------------------------------------------------
def _init_conv(key, cin, cout):
    k1, k2 = jax.random.split(key)
    bound = 1.0 / np.sqrt(cin * 9)
    w = jax.random.uniform(k1, (cout, cin, 3, 3), jnp.float32, -bound, bound)
    b = jax.random.uniform(k2, (cout,), jnp.float32, -bound, bound)
    return w, b


def make_params(key, inputchannels, encoderlayers, decoderlayers):
    params = {"enc": [], "dec": []}
    cin = inputchannels
    for cout in encoderlayers:
        key, sub = jax.random.split(key)
        params["enc"].append(_init_conv(sub, cin, cout))
        cin = cout
    for cout in decoderlayers:
        key, sub = jax.random.split(key)
        params["dec"].append(_init_conv(sub, cin, cout))
        cin = cout
    return params


# ---------------------------------------------------------------------------
# Pure-JAX reference (correctness sanity check)
# ---------------------------------------------------------------------------
def _reference_forward(x_nchw, params):
    def conv(x, w, b):
        y = jax.lax.conv_general_dilated(
            x, w, window_strides=(1, 1), padding=((1, 1), (1, 1)),
            dimension_numbers=("NCHW", "OIHW", "NCHW"))
        return y + b[None, :, None, None]

    x = x_nchw
    for w, b in params["enc"]:
        x = jax.nn.relu(conv(x, w, b))
        x = jax.lax.reduce_window(x, -jnp.inf, jax.lax.max,
                                  (1, 1, 2, 2), (1, 1, 2, 2), "VALID")
    for i, (w, b) in enumerate(params["dec"]):
        x = jnp.repeat(jnp.repeat(x, 2, axis=2), 2, axis=3)
        z = conv(x, w, b)
        x = jax.nn.sigmoid(z) if i == len(params["dec"]) - 1 else jax.nn.relu(z)
    return x


if __name__ == "__main__":
    # ConvAutoencoder(inputchannels=4, encoderlayers=[8,16],
    #                 decoderlayers=[8,4], stride=1, padding=1)
    inputchannels = 4
    encoderlayers = [8, 16]
    decoderlayers = [8, 4]

    key = jax.random.PRNGKey(0)
    kx, kp = jax.random.split(key)
    x = jax.random.uniform(kx, (2, inputchannels, 16, 16), jnp.float32)  # NCHW
    params = make_params(kp, inputchannels, encoderlayers, decoderlayers)

    fwd = jax.jit(conv_autoencoder_forward)
    out = jax.block_until_ready(fwd(x, params))

    ref = jax.block_until_ready(_reference_forward(x, params))
    assert out.shape == (2, inputchannels, 16, 16), out.shape
    assert out.dtype == jnp.float32
    np.testing.assert_allclose(np.asarray(out), np.asarray(ref),
                               atol=2e-4, rtol=2e-4)

    print("KERNEL_OK")
</pallas_src>

<mosaic_0001>
module attributes {stable_mosaic.version = 11 : i64} {
  func.func @kernel(%arg0: i32, %arg1: memref<1x8x256xf32, #tpu.memory_space<vmem>>, %arg2: memref<8x72xf32, #tpu.memory_space<vmem>>, %arg3: memref<8x1xf32, #tpu.memory_space<vmem>>, %arg4: memref<9x256xf32, #tpu.memory_space<vmem>>, %arg5: memref<256x64xf32, #tpu.memory_space<vmem>>, %arg6: memref<16x72xf32, #tpu.memory_space<vmem>>, %arg7: memref<16x1xf32, #tpu.memory_space<vmem>>, %arg8: memref<9x64xf32, #tpu.memory_space<vmem>>, %arg9: memref<64x16xf32, #tpu.memory_space<vmem>>, %arg10: memref<16x64xf32, #tpu.memory_space<vmem>>, %arg11: memref<8x144xf32, #tpu.memory_space<vmem>>, %arg12: memref<8x1xf32, #tpu.memory_space<vmem>>, %arg13: memref<9x64xf32, #tpu.memory_space<vmem>>, %arg14: memref<64x256xf32, #tpu.memory_space<vmem>>, %arg15: memref<8x72xf32, #tpu.memory_space<vmem>>, %arg16: memref<8x1xf32, #tpu.memory_space<vmem>>, %arg17: memref<9x256xf32, #tpu.memory_space<vmem>>, %arg18: memref<1x4x256xf32, #tpu.memory_space<vmem>>) attributes {dimension_semantics = [#tpu.dimension_semantics<parallel>], iteration_bounds = array<i64: 2>, scalar_prefetch = 0 : i64, scratch_operands = 0 : i64, tpu.core_type = #tpu.core_type<tc>, window_params = [{transform_indices = @transform_0, window_bounds = array<i64: 1, 8, 256>}, {pipeline_mode = #tpu.pipeline_mode<synchronous>, transform_indices = @transform_1, window_bounds = array<i64: 8, 72>}, {pipeline_mode = #tpu.pipeline_mode<synchronous>, transform_indices = @transform_2, window_bounds = array<i64: 8, 1>}, {pipeline_mode = #tpu.pipeline_mode<synchronous>, transform_indices = @transform_3, window_bounds = array<i64: 9, 256>}, {pipeline_mode = #tpu.pipeline_mode<synchronous>, transform_indices = @transform_4, window_bounds = array<i64: 256, 64>}, {pipeline_mode = #tpu.pipeline_mode<synchronous>, transform_indices = @transform_5, window_bounds = array<i64: 16, 72>}, {pipeline_mode = #tpu.pipeline_mode<synchronous>, transform_indices = @transform_6, window_bounds = array<i64: 16, 1>}, {pipeline_mode = #tpu.pipeline_mode<synchronous>, transform_indices = @transform_7, window_bounds = array<i64: 9, 64>}, {pipeline_mode = #tpu.pipeline_mode<synchronous>, transform_indices = @transform_8, window_bounds = array<i64: 64, 16>}, {pipeline_mode = #tpu.pipeline_mode<synchronous>, transform_indices = @transform_9, window_bounds = array<i64: 16, 64>}, {pipeline_mode = #tpu.pipeline_mode<synchronous>, transform_indices = @transform_10, window_bounds = array<i64: 8, 144>}, {pipeline_mode = #tpu.pipeline_mode<synchronous>, transform_indices = @transform_11, window_bounds = array<i64: 8, 1>}, {pipeline_mode = #tpu.pipeline_mode<synchronous>, transform_indices = @transform_12, window_bounds = array<i64: 9, 64>}, {pipeline_mode = #tpu.pipeline_mode<synchronous>, transform_indices = @transform_13, window_bounds = array<i64: 64, 256>}, {pipeline_mode = #tpu.pipeline_mode<synchronous>, transform_indices = @transform_14, window_bounds = array<i64: 8, 72>}, {pipeline_mode = #tpu.pipeline_mode<synchronous>, transform_indices = @transform_15, window_bounds = array<i64: 8, 1>}, {pipeline_mode = #tpu.pipeline_mode<synchronous>, transform_indices = @transform_16, window_bounds = array<i64: 9, 256>}, {transform_indices = @transform_17, window_bounds = array<i64: 1, 4, 256>}]} {
    %c0 = arith.constant 0 : index
    %c0_0 = arith.constant 0 : index
    %c0_1 = arith.constant 0 : index
    %0 = vector.load %arg1[%c0, %c0_0, %c0_1] : memref<1x8x256xf32, #tpu.memory_space<vmem>>, vector<1x8x256xf32>
    %1 = vector.shape_cast %0 : vector<1x8x256xf32> to vector<8x256xf32>
    %c0_2 = arith.constant 0 : index
    %c0_3 = arith.constant 0 : index
    %2 = vector.load %arg2[%c0_2, %c0_3] : memref<8x72xf32, #tpu.memory_space<vmem>>, vector<8x72xf32>
    %c0_4 = arith.constant 0 : index
    %c0_5 = arith.constant 0 : index
    %3 = vector.load %arg3[%c0_4, %c0_5] : memref<8x1xf32, #tpu.memory_space<vmem>>, vector<8x1xf32>
    %c0_6 = arith.constant 0 : index
    %c0_7 = arith.constant 0 : index
    %4 = vector.load %arg4[%c0_6, %c0_7] : memref<9x256xf32, #tpu.memory_space<vmem>>, vector<9x256xf32>
    %c0_8 = arith.constant 0 : index
    %c0_9 = arith.constant 0 : index
    %5 = vector.load %arg5[%c0_8, %c0_9] : memref<256x64xf32, #tpu.memory_space<vmem>>, vector<256x64xf32>
    %6 = vector.extract_strided_slice %1 {offsets = [0, 239], sizes = [8, 17], strides = [1, 1]} : vector<8x256xf32> to vector<8x17xf32>
    %7 = vector.extract_strided_slice %1 {offsets = [0, 0], sizes = [8, 239], strides = [1, 1]} : vector<8x256xf32> to vector<8x239xf32>
    %8 = tpu.concatenate %6, %7 in 1 : vector<8x17xf32>, vector<8x239xf32> -> vector<8x256xf32>
    %9 = vector.extract_strided_slice %4 {offsets = [0, 0], sizes = [1, 256], strides = [1, 1]} : vector<9x256xf32> to vector<1x256xf32>
    %10 = vector.broadcast %9 : vector<1x256xf32> to vector<8x256xf32>
    %11 = arith.mulf %8, %10 : vector<8x256xf32>
    %12 = vector.extract_strided_slice %1 {offsets = [0, 240], sizes = [8, 16], strides = [1, 1]} : vector<8x256xf32> to vector<8x16xf32>
    %13 = vector.extract_strided_slice %1 {offsets = [0, 0], sizes = [8, 240], strides = [1, 1]} : vector<8x256xf32> to vector<8x240xf32>
    %14 = tpu.concatenate %12, %13 in 1 : vector<8x16xf32>, vector<8x240xf32> -> vector<8x256xf32>
    %15 = vector.extract_strided_slice %4 {offsets = [1, 0], sizes = [1, 256], strides = [1, 1]} : vector<9x256xf32> to vector<1x256xf32>
    %16 = vector.broadcast %15 : vector<1x256xf32> to vector<8x256xf32>
    %17 = arith.mulf %14, %16 : vector<8x256xf32>
    %18 = vector.extract_strided_slice %1 {offsets = [0, 241], sizes = [8, 15], strides = [1, 1]} : vector<8x256xf32> to vector<8x15xf32>
    %19 = vector.extract_strided_slice %1 {offsets = [0, 0], sizes = [8, 241], strides = [1, 1]} : vector<8x256xf32> to vector<8x241xf32>
    %20 = tpu.concatenate %18, %19 in 1 : vector<8x15xf32>, vector<8x241xf32> -> vector<8x256xf32>
    %21 = vector.extract_strided_slice %4 {offsets = [2, 0], sizes = [1, 256], strides = [1, 1]} : vector<9x256xf32> to vector<1x256xf32>
    %22 = vector.broadcast %21 : vector<1x256xf32> to vector<8x256xf32>
    %23 = arith.mulf %20, %22 : vector<8x256xf32>
    %24 = vector.extract_strided_slice %1 {offsets = [0, 255], sizes = [8, 1], strides = [1, 1]} : vector<8x256xf32> to vector<8x1xf32>
    %25 = vector.extract_strided_slice %1 {offsets = [0, 0], sizes = [8, 255], strides = [1, 1]} : vector<8x256xf32> to vector<8x255xf32>
    %26 = tpu.concatenate %24, %25 in 1 : vector<8x1xf32>, vector<8x255xf32> -> vector<8x256xf32>
    %27 = vector.extract_strided_slice %4 {offsets = [3, 0], sizes = [1, 256], strides = [1, 1]} : vector<9x256xf32> to vector<1x256xf32>
    %28 = vector.broadcast %27 : vector<1x256xf32> to vector<8x256xf32>
    %29 = arith.mulf %26, %28 : vector<8x256xf32>
    %30 = vector.extract_strided_slice %1 {offsets = [0, 1], sizes = [8, 255], strides = [1, 1]} : vector<8x256xf32> to vector<8x255xf32>
    %31 = vector.extract_strided_slice %1 {offsets = [0, 0], sizes = [8, 1], strides = [1, 1]} : vector<8x256xf32> to vector<8x1xf32>
    %32 = tpu.concatenate %30, %31 in 1 : vector<8x255xf32>, vector<8x1xf32> -> vector<8x256xf32>
    %33 = vector.extract_strided_slice %4 {offsets = [5, 0], sizes = [1, 256], strides = [1, 1]} : vector<9x256xf32> to vector<1x256xf32>
    %34 = vector.broadcast %33 : vector<1x256xf32> to vector<8x256xf32>
    %35 = arith.mulf %32, %34 : vector<8x256xf32>
    %36 = vector.extract_strided_slice %1 {offsets = [0, 15], sizes = [8, 241], strides = [1, 1]} : vector<8x256xf32> to vector<8x241xf32>
    %37 = vector.extract_strided_slice %1 {offsets = [0, 0], sizes = [8, 15], strides = [1, 1]} : vector<8x256xf32> to vector<8x15xf32>
    %38 = tpu.concatenate %36, %37 in 1 : vector<8x241xf32>, vector<8x15xf32> -> vector<8x256xf32>
    %39 = vector.extract_strided_slice %4 {offsets = [6, 0], sizes = [1, 256], strides = [1, 1]} : vector<9x256xf32> to vector<1x256xf32>
    %40 = vector.broadcast %39 : vector<1x256xf32> to vector<8x256xf32>
    %41 = arith.mulf %38, %40 : vector<8x256xf32>
    %42 = vector.extract_strided_slice %1 {offsets = [0, 16], sizes = [8, 240], strides = [1, 1]} : vector<8x256xf32> to vector<8x240xf32>
    %43 = vector.extract_strided_slice %1 {offsets = [0, 0], sizes = [8, 16], strides = [1, 1]} : vector<8x256xf32> to vector<8x16xf32>
    %44 = tpu.concatenate %42, %43 in 1 : vector<8x240xf32>, vector<8x16xf32> -> vector<8x256xf32>
    %45 = vector.extract_strided_slice %4 {offsets = [7, 0], sizes = [1, 256], strides = [1, 1]} : vector<9x256xf32> to vector<1x256xf32>
    %46 = vector.broadcast %45 : vector<1x256xf32> to vector<8x256xf32>
    %47 = arith.mulf %44, %46 : vector<8x256xf32>
    %48 = vector.extract_strided_slice %1 {offsets = [0, 17], sizes = [8, 239], strides = [1, 1]} : vector<8x256xf32> to vector<8x239xf32>
    %49 = vector.extract_strided_slice %1 {offsets = [0, 0], sizes = [8, 17], strides = [1, 1]} : vector<8x256xf32> to vector<8x17xf32>
    %50 = tpu.concatenate %48, %49 in 1 : vector<8x239xf32>, vector<8x17xf32> -> vector<8x256xf32>
    %51 = vector.extract_strided_slice %4 {offsets = [8, 0], sizes = [1, 256], strides = [1, 1]} : vector<9x256xf32> to vector<1x256xf32>
    %52 = vector.broadcast %51 : vector<1x256xf32> to vector<8x256xf32>
    %53 = arith.mulf %50, %52 : vector<8x256xf32>
    %54 = tpu.concatenate %11, %17, %23, %29, %1, %35, %41, %47, %53 in 0 : vector<8x256xf32>, vector<8x256xf32>, vector<8x256xf32>, vector<8x256xf32>, vector<8x256xf32>, vector<8x256xf32>, vector<8x256xf32>, vector<8x256xf32>, vector<8x256xf32> -> vector<72x256xf32>
    %cst = arith.constant dense<0.000000e+00> : vector<8x256xf32>
    %55 = tpu.matmul %2, %54, %cst {dimension_numbers = #tpu.dot_dimension_numbers<[1], [0], [0], [1], [0, 0, 1, 1], [], []>} : vector<8x72xf32>, vector<72x256xf32>, vector<8x256xf32> -> vector<8x256xf32>
    %56 = vector.broadcast %3 : vector<8x1xf32> to vector<8x256xf32>
    %57 = arith.addf %55, %56 : vector<8x256xf32>
    %cst_10 = arith.constant 0.000000e+00 : f32
    %58 = vector.broadcast %cst_10 : f32 to vector<8x256xf32>
    %59 = arith.maximumf %57, %58 : vector<8x256xf32>
    %60 = vector.extract_strided_slice %59 {offsets = [0, 1], sizes = [8, 255], strides = [1, 1]} : vector<8x256xf32> to vector<8x255xf32>
    %61 = vector.extract_strided_slice %59 {offsets = [0, 0], sizes = [8, 1], strides = [1, 1]} : vector<8x256xf32> to vector<8x1xf32>
    %62 = tpu.concatenate %60, %61 in 1 : vector<8x255xf32>, vector<8x1xf32> -> vector<8x256xf32>
    %63 = arith.maximumf %59, %62 : vector<8x256xf32>
    %64 = vector.extract_strided_slice %63 {offsets = [0, 16], sizes = [8, 240], strides = [1, 1]} : vector<8x256xf32> to vector<8x240xf32>
    %65 = vector.extract_strided_slice %63 {offsets = [0, 0], sizes = [8, 16], strides = [1, 1]} : vector<8x256xf32> to vector<8x16xf32>
    %66 = tpu.concatenate %64, %65 in 1 : vector<8x240xf32>, vector<8x16xf32> -> vector<8x256xf32>
    %67 = arith.maximumf %63, %66 : vector<8x256xf32>
    %cst_11 = arith.constant dense<0.000000e+00> : vector<8x64xf32>
    %68 = tpu.matmul %67, %5, %cst_11 {dimension_numbers = #tpu.dot_dimension_numbers<[1], [0], [0], [1], [0, 0, 1, 1], [], []>} : vector<8x256xf32>, vector<256x64xf32>, vector<8x64xf32> -> vector<8x64xf32>
    %c0_12 = arith.constant 0 : index
    %c0_13 = arith.constant 0 : index
    %69 = vector.load %arg6[%c0_12, %c0_13] : memref<16x72xf32, #tpu.memory_space<vmem>>, vector<16x72xf32>
    %c0_14 = arith.constant 0 : index
    %c0_15 = arith.constant 0 : index
    %70 = vector.load %arg7[%c0_14, %c0_15] : memref<16x1xf32, #tpu.memory_space<vmem>>, vector<16x1xf32>
    %c0_16 = arith.constant 0 : index
    %c0_17 = arith.constant 0 : index
    %71 = vector.load %arg8[%c0_16, %c0_17] : memref<9x64xf32, #tpu.memory_space<vmem>>, vector<9x64xf32>
    %c0_18 = arith.constant 0 : index
    %c0_19 = arith.constant 0 : index
    %72 = vector.load %arg9[%c0_18, %c0_19] : memref<64x16xf32, #tpu.memory_space<vmem>>, vector<64x16xf32>
    %73 = vector.extract_strided_slice %68 {offsets = [0, 55], sizes = [8, 9], strides = [1, 1]} : vector<8x64xf32> to vector<8x9xf32>
    %74 = vector.extract_strided_slice %68 {offsets = [0, 0], sizes = [8, 55], strides = [1, 1]} : vector<8x64xf32> to vector<8x55xf32>
    %75 = tpu.concatenate %73, %74 in 1 : vector<8x9xf32>, vector<8x55xf32> -> vector<8x64xf32>
    %76 = vector.extract_strided_slice %71 {offsets = [0, 0], sizes = [1, 64], strides = [1, 1]} : vector<9x64xf32> to vector<1x64xf32>
    %77 = vector.broadcast %76 : vector<1x64xf32> to vector<8x64xf32>
    %78 = arith.mulf %75, %77 : vector<8x64xf32>
    %79 = vector.extract_strided_slice %68 {offsets = [0, 56], sizes = [8, 8], strides = [1, 1]} : vector<8x64xf32> to vector<8x8xf32>
    %80 = vector.extract_strided_slice %68 {offsets = [0, 0], sizes = [8, 56], strides = [1, 1]} : vector<8x64xf32> to vector<8x56xf32>
    %81 = tpu.concatenate %79, %80 in 1 : vector<8x8xf32>, vector<8x56xf32> -> vector<8x64xf32>
    %82 = vector.extract_strided_slice %71 {offsets = [1, 0], sizes = [1, 64], strides = [1, 1]} : vector<9x64xf32> to vector<1x64xf32>
    %83 = vector.broadcast %82 : vector<1x64xf32> to vector<8x64xf32>
    %84 = arith.mulf %81, %83 : vector<8x64xf32>
    %85 = vector.extract_strided_slice %68 {offsets = [0, 57], sizes = [8, 7], strides = [1, 1]} : vector<8x64xf32> to vector<8x7xf32>
    %86 = vector.extract_strided_slice %68 {offsets = [0, 0], sizes = [8, 57], strides = [1, 1]} : vector<8x64xf32> to vector<8x57xf32>
    %87 = tpu.concatenate %85, %86 in 1 : vector<8x7xf32>, vector<8x57xf32> -> vector<8x64xf32>
    %88 = vector.extract_strided_slice %71 {offsets = [2, 0], sizes = [1, 64], strides = [1, 1]} : vector<9x64xf32> to vector<1x64xf32>
    %89 = vector.broadcast %88 : vector<1x64xf32> to vector<8x64xf32>
    %90 = arith.mulf %87, %89 : vector<8x64xf32>
    %91 = vector.extract_strided_slice %68 {offsets = [0, 63], sizes = [8, 1], strides = [1, 1]} : vector<8x64xf32> to vector<8x1xf32>
    %92 = vector.extract_strided_slice %68 {offsets = [0, 0], sizes = [8, 63], strides = [1, 1]} : vector<8x64xf32> to vector<8x63xf32>
    %93 = tpu.concatenate %91, %92 in 1 : vector<8x1xf32>, vector<8x63xf32> -> vector<8x64xf32>
    %94 = vector.extract_strided_slice %71 {offsets = [3, 0], sizes = [1, 64], strides = [1, 1]} : vector<9x64xf32> to vector<1x64xf32>
    %95 = vector.broadcast %94 : vector<1x64xf32> to vector<8x64xf32>
    %96 = arith.mulf %93, %95 : vector<8x64xf32>
    %97 = vector.extract_strided_slice %68 {offsets = [0, 1], sizes = [8, 63], strides = [1, 1]} : vector<8x64xf32> to vector<8x63xf32>
    %98 = vector.extract_strided_slice %68 {offsets = [0, 0], sizes = [8, 1], strides = [1, 1]} : vector<8x64xf32> to vector<8x1xf32>
    %99 = tpu.concatenate %97, %98 in 1 : vector<8x63xf32>, vector<8x1xf32> -> vector<8x64xf32>
    %100 = vector.extract_strided_slice %71 {offsets = [5, 0], sizes = [1, 64], strides = [1, 1]} : vector<9x64xf32> to vector<1x64xf32>
    %101 = vector.broadcast %100 : vector<1x64xf32> to vector<8x64xf32>
    %102 = arith.mulf %99, %101 : vector<8x64xf32>
    %103 = vector.extract_strided_slice %68 {offsets = [0, 7], sizes = [8, 57], strides = [1, 1]} : vector<8x64xf32> to vector<8x57xf32>
    %104 = vector.extract_strided_slice %68 {offsets = [0, 0], sizes = [8, 7], strides = [1, 1]} : vector<8x64xf32> to vector<8x7xf32>
    %105 = tpu.concatenate %103, %104 in 1 : vector<8x57xf32>, vector<8x7xf32> -> vector<8x64xf32>
    %106 = vector.extract_strided_slice %71 {offsets = [6, 0], sizes = [1, 64], strides = [1, 1]} : vector<9x64xf32> to vector<1x64xf32>
    %107 = vector.broadcast %106 : vector<1x64xf32> to vector<8x64xf32>
    %108 = arith.mulf %105, %107 : vector<8x64xf32>
    %109 = vector.extract_strided_slice %68 {offsets = [0, 8], sizes = [8, 56], strides = [1, 1]} : vector<8x64xf32> to vector<8x56xf32>
    %110 = vector.extract_strided_slice %68 {offsets = [0, 0], sizes = [8, 8], strides = [1, 1]} : vector<8x64xf32> to vector<8x8xf32>
    %111 = tpu.concatenate %109, %110 in 1 : vector<8x56xf32>, vector<8x8xf32> -> vector<8x64xf32>
    %112 = vector.extract_strided_slice %71 {offsets = [7, 0], sizes = [1, 64], strides = [1, 1]} : vector<9x64xf32> to vector<1x64xf32>
    %113 = vector.broadcast %112 : vector<1x64xf32> to vector<8x64xf32>
    %114 = arith.mulf %111, %113 : vector<8x64xf32>
    %115 = vector.extract_strided_slice %68 {offsets = [0, 9], sizes = [8, 55], strides = [1, 1]} : vector<8x64xf32> to vector<8x55xf32>
    %116 = vector.extract_strided_slice %68 {offsets = [0, 0], sizes = [8, 9], strides = [1, 1]} : vector<8x64xf32> to vector<8x9xf32>
    %117 = tpu.concatenate %115, %116 in 1 : vector<8x55xf32>, vector<8x9xf32> -> vector<8x64xf32>
    %118 = vector.extract_strided_slice %71 {offsets = [8, 0], sizes = [1, 64], strides = [1, 1]} : vector<9x64xf32> to vector<1x64xf32>
    %119 = vector.broadcast %118 : vector<1x64xf32> to vector<8x64xf32>
    %120 = arith.mulf %117, %119 : vector<8x64xf32>
    %121 = tpu.concatenate %78, %84, %90, %96, %68, %102, %108, %114, %120 in 0 : vector<8x64xf32>, vector<8x64xf32>, vector<8x64xf32>, vector<8x64xf32>, vector<8x64xf32>, vector<8x64xf32>, vector<8x64xf32>, vector<8x64xf32>, vector<8x64xf32> -> vector<72x64xf32>
    %cst_20 = arith.constant dense<0.000000e+00> : vector<16x64xf32>
    %122 = tpu.matmul %69, %121, %cst_20 {dimension_numbers = #tpu.dot_dimension_numbers<[1], [0], [0], [1], [0, 0, 1, 1], [], []>} : vector<16x72xf32>, vector<72x64xf32>, vector<16x64xf32> -> vector<16x64xf32>
    %123 = vector.broadcast %70 : vector<16x1xf32> to vector<16x64xf32>
    %124 = arith.addf %122, %123 : vector<16x64xf32>
    %cst_21 = arith.constant 0.000000e+00 : f32
    %125 = vector.broadcast %cst_21 : f32 to vector<16x64xf32>
    %126 = arith.maximumf %124, %125 : vector<16x64xf32>
    %127 = vector.extract_strided_slice %126 {offsets = [0, 1], sizes = [16, 63], strides = [1, 1]} : vector<16x64xf32> to vector<16x63xf32>
    %128 = vector.extract_strided_slice %126 {offsets = [0, 0], sizes = [16, 1], strides = [1, 1]} : vector<16x64xf32> to vector<16x1xf32>
    %129 = tpu.concatenate %127, %128 in 1 : vector<16x63xf32>, vector<16x1xf32> -> vector<16x64xf32>
    %130 = arith.maximumf %126, %129 : vector<16x64xf32>
    %131 = vector.extract_strided_slice %130 {offsets = [0, 8], sizes = [16, 56], strides = [1, 1]} : vector<16x64xf32> to vector<16x56xf32>
    %132 = vector.extract_strided_slice %130 {offsets = [0, 0], sizes = [16, 8], strides = [1, 1]} : vector<16x64xf32> to vector<16x8xf32>
    %133 = tpu.concatenate %131, %132 in 1 : vector<16x56xf32>, vector<16x8xf32> -> vector<16x64xf32>
    %134 = arith.maximumf %130, %133 : vector<16x64xf32>
    %cst_22 = arith.constant dense<0.000000e+00> : vector<16x16xf32>
    %135 = tpu.matmul %134, %72, %cst_22 {dimension_numbers = #tpu.dot_dimension_numbers<[1], [0], [0], [1], [0, 0, 1, 1], [], []>} : vector<16x64xf32>, vector<64x16xf32>, vector<16x16xf32> -> vector<16x16xf32>
    %c0_23 = arith.constant 0 : index
    %c0_24 = arith.constant 0 : index
    %136 = vector.load %arg10[%c0_23, %c0_24] : memref<16x64xf32, #tpu.memory_space<vmem>>, vector<16x64xf32>
    %c0_25 = arith.constant 0 : index
    %c0_26 = arith.constant 0 : index
    %137 = vector.load %arg11[%c0_25, %c0_26] : memref<8x144xf32, #tpu.memory_space<vmem>>, vector<8x144xf32>
    %c0_27 = arith.constant 0 : index
    %c0_28 = arith.constant 0 : index
    %138 = vector.load %arg12[%c0_27, %c0_28] : memref<8x1xf32, #tpu.memory_space<vmem>>, vector<8x1xf32>
    %c0_29 = arith.constant 0 : index
    %c0_30 = arith.constant 0 : index
    %139 = vector.load %arg13[%c0_29, %c0_30] : memref<9x64xf32, #tpu.memory_space<vmem>>, vector<9x64xf32>
    %cst_31 = arith.constant dense<0.000000e+00> : vector<16x64xf32>
    %140 = tpu.matmul %135, %136, %cst_31 {dimension_numbers = #tpu.dot_dimension_numbers<[1], [0], [0], [1], [0, 0, 1, 1], [], []>} : vector<16x16xf32>, vector<16x64xf32>, vector<16x64xf32> -> vector<16x64xf32>
    %141 = vector.extract_strided_slice %140 {offsets = [0, 55], sizes = [16, 9], strides = [1, 1]} : vector<16x64xf32> to vector<16x9xf32>
    %142 = vector.extract_strided_slice %140 {offsets = [0, 0], sizes = [16, 55], strides = [1, 1]} : vector<16x64xf32> to vector<16x55xf32>
    %143 = tpu.concatenate %141, %142 in 1 : vector<16x9xf32>, vector<16x55xf32> -> vector<16x64xf32>
    %144 = vector.extract_strided_slice %139 {offsets = [0, 0], sizes = [1, 64], strides = [1, 1]} : vector<9x64xf32> to vector<1x64xf32>
    %145 = vector.broadcast %144 : vector<1x64xf32> to vector<16x64xf32>
    %146 = arith.mulf %143, %145 : vector<16x64xf32>
    %147 = vector.extract_strided_slice %140 {offsets = [0, 56], sizes = [16, 8], strides = [1, 1]} : vector<16x64xf32> to vector<16x8xf32>
    %148 = vector.extract_strided_slice %140 {offsets = [0, 0], sizes = [16, 56], strides = [1, 1]} : vector<16x64xf32> to vector<16x56xf32>
    %149 = tpu.concatenate %147, %148 in 1 : vector<16x8xf32>, vector<16x56xf32> -> vector<16x64xf32>
    %150 = vector.extract_strided_slice %139 {offsets = [1, 0], sizes = [1, 64], strides = [1, 1]} : vector<9x64xf32> to vector<1x64xf32>
    %151 = vector.broadcast %150 : vector<1x64xf32> to vector<16x64xf32>
    %152 = arith.mulf %149, %151 : vector<16x64xf32>
    %153 = vector.extract_strided_slice %140 {offsets = [0, 57], sizes = [16, 7], strides = [1, 1]} : vector<16x64xf32> to vector<16x7xf32>
    %154 = vector.extract_strided_slice %140 {offsets = [0, 0], sizes = [16, 57], strides = [1, 1]} : vector<16x64xf32> to vector<16x57xf32>
    %155 = tpu.concatenate %153, %154 in 1 : vector<16x7xf32>, vector<16x57xf32> -> vector<16x64xf32>
    %156 = vector.extract_strided_slice %139 {offsets = [2, 0], sizes = [1, 64], strides = [1, 1]} : vector<9x64xf32> to vector<1x64xf32>
    %157 = vector.broadcast %156 : vector<1x64xf32> to vector<16x64xf32>
    %158 = arith.mulf %155, %157 : vector<16x64xf32>
    %159 = vector.extract_strided_slice %140 {offsets = [0, 63], sizes = [16, 1], strides = [1, 1]} : vector<16x64xf32> to vector<16x1xf32>
    %160 = vector.extract_strided_slice %140 {offsets = [0, 0], sizes = [16, 63], strides = [1, 1]} : vector<16x64xf32> to vector<16x63xf32>
    %161 = tpu.concatenate %159, %160 in 1 : vector<16x1xf32>, vector<16x63xf32> -> vector<16x64xf32>
    %162 = vector.extract_strided_slice %139 {offsets = [3, 0], sizes = [1, 64], strides = [1, 1]} : vector<9x64xf32> to vector<1x64xf32>
    %163 = vector.broadcast %162 : vector<1x64xf32> to vector<16x64xf32>
    %164 = arith.mulf %161, %163 : vector<16x64xf32>
    %165 = vector.extract_strided_slice %140 {offsets = [0, 1], sizes = [16, 63], strides = [1, 1]} : vector<16x64xf32> to vector<16x63xf32>
    %166 = vector.extract_strided_slice %140 {offsets = [0, 0], sizes = [16, 1], strides = [1, 1]} : vector<16x64xf32> to vector<16x1xf32>
    %167 = tpu.concatenate %165, %166 in 1 : vector<16x63xf32>, vector<16x1xf32> -> vector<16x64xf32>
    %168 = vector.extract_strided_slice %139 {offsets = [5, 0], sizes = [1, 64], strides = [1, 1]} : vector<9x64xf32> to vector<1x64xf32>
    %169 = vector.broadcast %168 : vector<1x64xf32> to vector<16x64xf32>
    %170 = arith.mulf %167, %169 : vector<16x64xf32>
    %171 = vector.extract_strided_slice %140 {offsets = [0, 7], sizes = [16, 57], strides = [1, 1]} : vector<16x64xf32> to vector<16x57xf32>
    %172 = vector.extract_strided_slice %140 {offsets = [0, 0], sizes = [16, 7], strides = [1, 1]} : vector<16x64xf32> to vector<16x7xf32>
    %173 = tpu.concatenate %171, %172 in 1 : vector<16x57xf32>, vector<16x7xf32> -> vector<16x64xf32>
    %174 = vector.extract_strided_slice %139 {offsets = [6, 0], sizes = [1, 64], strides = [1, 1]} : vector<9x64xf32> to vector<1x64xf32>
    %175 = vector.broadcast %174 : vector<1x64xf32> to vector<16x64xf32>
    %176 = arith.mulf %173, %175 : vector<16x64xf32>
    %177 = vector.extract_strided_slice %140 {offsets = [0, 8], sizes = [16, 56], strides = [1, 1]} : vector<16x64xf32> to vector<16x56xf32>
    %178 = vector.extract_strided_slice %140 {offsets = [0, 0], sizes = [16, 8], strides = [1, 1]} : vector<16x64xf32> to vector<16x8xf32>
    %179 = tpu.concatenate %177, %178 in 1 : vector<16x56xf32>, vector<16x8xf32> -> vector<16x64xf32>
    %180 = vector.extract_strided_slice %139 {offsets = [7, 0], sizes = [1, 64], strides = [1, 1]} : vector<9x64xf32> to vector<1x64xf32>
    %181 = vector.broadcast %180 : vector<1x64xf32> to vector<16x64xf32>
    %182 = arith.mulf %179, %181 : vector<16x64xf32>
    %183 = vector.extract_strided_slice %140 {offsets = [0, 9], sizes = [16, 55], strides = [1, 1]} : vector<16x64xf32> to vector<16x55xf32>
    %184 = vector.extract_strided_slice %140 {offsets = [0, 0], sizes = [16, 9], strides = [1, 1]} : vector<16x64xf32> to vector<16x9xf32>
    %185 = tpu.concatenate %183, %184 in 1 : vector<16x55xf32>, vector<16x9xf32> -> vector<16x64xf32>
    %186 = vector.extract_strided_slice %139 {offsets = [8, 0], sizes = [1, 64], strides = [1, 1]} : vector<9x64xf32> to vector<1x64xf32>
    %187 = vector.broadcast %186 : vector<1x64xf32> to vector<16x64xf32>
    %188 = arith.mulf %185, %187 : vector<16x64xf32>
    %189 = tpu.concatenate %146, %152, %158, %164, %140, %170, %176, %182, %188 in 0 : vector<16x64xf32>, vector<16x64xf32>, vector<16x64xf32>, vector<16x64xf32>, vector<16x64xf32>, vector<16x64xf32>, vector<16x64xf32>, vector<16x64xf32>, vector<16x64xf32> -> vector<144x64xf32>
    %cst_32 = arith.constant dense<0.000000e+00> : vector<8x64xf32>
    %190 = tpu.matmul %137, %189, %cst_32 {dimension_numbers = #tpu.dot_dimension_numbers<[1], [0], [0], [1], [0, 0, 1, 1], [], []>} : vector<8x144xf32>, vector<144x64xf32>, vector<8x64xf32> -> vector<8x64xf32>
    %191 = vector.broadcast %138 : vector<8x1xf32> to vector<8x64xf32>
    %192 = arith.addf %190, %191 : vector<8x64xf32>
    %cst_33 = arith.constant 0.000000e+00 : f32
    %193 = vector.broadcast %cst_33 : f32 to vector<8x64xf32>
    %194 = arith.maximumf %192, %193 : vector<8x64xf32>
    %c0_34 = arith.constant 0 : index
    %c0_35 = arith.constant 0 : index
    %195 = vector.load %arg14[%c0_34, %c0_35] : memref<64x256xf32, #tpu.memory_space<vmem>>, vector<64x256xf32>
    %c0_36 = arith.constant 0 : index
    %c0_37 = arith.constant 0 : index
    %196 = vector.load %arg15[%c0_36, %c0_37] : memref<8x72xf32, #tpu.memory_space<vmem>>, vector<8x72xf32>
    %c0_38 = arith.constant 0 : index
    %c0_39 = arith.constant 0 : index
    %197 = vector.load %arg16[%c0_38, %c0_39] : memref<8x1xf32, #tpu.memory_space<vmem>>, vector<8x1xf32>
    %c0_40 = arith.constant 0 : index
    %c0_41 = arith.constant 0 : index
    %198 = vector.load %arg17[%c0_40, %c0_41] : memref<9x256xf32, #tpu.memory_space<vmem>>, vector<9x256xf32>
    %cst_42 = arith.constant dense<0.000000e+00> : vector<8x256xf32>
    %199 = tpu.matmul %194, %195, %cst_42 {dimension_numbers = #tpu.dot_dimension_numbers<[1], [0], [0], [1], [0, 0, 1, 1], [], []>} : vector<8x64xf32>, vector<64x256xf32>, vector<8x256xf32> -> vector<8x256xf32>
    %200 = vector.extract_strided_slice %199 {offsets = [0, 239], sizes = [8, 17], strides = [1, 1]} : vector<8x256xf32> to vector<8x17xf32>
    %201 = vector.extract_strided_slice %199 {offsets = [0, 0], sizes = [8, 239], strides = [1, 1]} : vector<8x256xf32> to vector<8x239xf32>
    %202 = tpu.concatenate %200, %201 in 1 : vector<8x17xf32>, vector<8x239xf32> -> vector<8x256xf32>
    %203 = vector.extract_strided_slice %198 {offsets = [0, 0], sizes = [1, 256], strides = [1, 1]} : vector<9x256xf32> to vector<1x256xf32>
    %204 = vector.broadcast %203 : vector<1x256xf32> to vector<8x256xf32>
    %205 = arith.mulf %202, %204 : vector<8x256xf32>
    %206 = vector.extract_strided_slice %199 {offsets = [0, 240], sizes = [8, 16], strides = [1, 1]} : vector<8x256xf32> to vector<8x16xf32>
    %207 = vector.extract_strided_slice %199 {offsets = [0, 0], sizes = [8, 240], strides = [1, 1]} : vector<8x256xf32> to vector<8x240xf32>
    %208 = tpu.concatenate %206, %207 in 1 : vector<8x16xf32>, vector<8x240xf32> -> vector<8x256xf32>
    %209 = vector.extract_strided_slice %198 {offsets = [1, 0], sizes = [1, 256], strides = [1, 1]} : vector<9x256xf32> to vector<1x256xf32>
    %210 = vector.broadcast %209 : vector<1x256xf32> to vector<8x256xf32>
    %211 = arith.mulf %208, %210 : vector<8x256xf32>
    %212 = vector.extract_strided_slice %199 {offsets = [0, 241], sizes = [8, 15], strides = [1, 1]} : vector<8x256xf32> to vector<8x15xf32>
    %213 = vector.extract_strided_slice %199 {offsets = [0, 0], sizes = [8, 241], strides = [1, 1]} : vector<8x256xf32> to vector<8x241xf32>
    %214 = tpu.concatenate %212, %213 in 1 : vector<8x15xf32>, vector<8x241xf32> -> vector<8x256xf32>
    %215 = vector.extract_strided_slice %198 {offsets = [2, 0], sizes = [1, 256], strides = [1, 1]} : vector<9x256xf32> to vector<1x256xf32>
    %216 = vector.broadcast %215 : vector<1x256xf32> to vector<8x256xf32>
    %217 = arith.mulf %214, %216 : vector<8x256xf32>
    %218 = vector.extract_strided_slice %199 {offsets = [0, 255], sizes = [8, 1], strides = [1, 1]} : vector<8x256xf32> to vector<8x1xf32>
    %219 = vector.extract_strided_slice %199 {offsets = [0, 0], sizes = [8, 255], strides = [1, 1]} : vector<8x256xf32> to vector<8x255xf32>
    %220 = tpu.concatenate %218, %219 in 1 : vector<8x1xf32>, vector<8x255xf32> -> vector<8x256xf32>
    %221 = vector.extract_strided_slice %198 {offsets = [3, 0], sizes = [1, 256], strides = [1, 1]} : vector<9x256xf32> to vector<1x256xf32>
    %222 = vector.broadcast %221 : vector<1x256xf32> to vector<8x256xf32>
    %223 = arith.mulf %220, %222 : vector<8x256xf32>
    %224 = vector.extract_strided_slice %199 {offsets = [0, 1], sizes = [8, 255], strides = [1, 1]} : vector<8x256xf32> to vector<8x255xf32>
    %225 = vector.extract_strided_slice %199 {offsets = [0, 0], sizes = [8, 1], strides = [1, 1]} : vector<8x256xf32> to vector<8x1xf32>
    %226 = tpu.concatenate %224, %225 in 1 : vector<8x255xf32>, vector<8x1xf32> -> vector<8x256xf32>
    %227 = vector.extract_strided_slice %198 {offsets = [5, 0], sizes = [1, 256], strides = [1, 1]} : vector<9x256xf32> to vector<1x256xf32>
    %228 = vector.broadcast %227 : vector<1x256xf32> to vector<8x256xf32>
    %229 = arith.mulf %226, %228 : vector<8x256xf32>
    %230 = vector.extract_strided_slice %199 {offsets = [0, 15], sizes = [8, 241], strides = [1, 1]} : vector<8x256xf32> to vector<8x241xf32>
    %231 = vector.extract_strided_slice %199 {offsets = [0, 0], sizes = [8, 15], strides = [1, 1]} : vector<8x256xf32> to vector<8x15xf32>
    %232 = tpu.concatenate %230, %231 in 1 : vector<8x241xf32>, vector<8x15xf32> -> vector<8x256xf32>
    %233 = vector.extract_strided_slice %198 {offsets = [6, 0], sizes = [1, 256], strides = [1, 1]} : vector<9x256xf32> to vector<1x256xf32>
    %234 = vector.broadcast %233 : vector<1x256xf32> to vector<8x256xf32>
    %235 = arith.mulf %232, %234 : vector<8x256xf32>
    %236 = vector.extract_strided_slice %199 {offsets = [0, 16], sizes = [8, 240], strides = [1, 1]} : vector<8x256xf32> to vector<8x240xf32>
    %237 = vector.extract_strided_slice %199 {offsets = [0, 0], sizes = [8, 16], strides = [1, 1]} : vector<8x256xf32> to vector<8x16xf32>
    %238 = tpu.concatenate %236, %237 in 1 : vector<8x240xf32>, vector<8x16xf32> -> vector<8x256xf32>
    %239 = vector.extract_strided_slice %198 {offsets = [7, 0], sizes = [1, 256], strides = [1, 1]} : vector<9x256xf32> to vector<1x256xf32>
    %240 = vector.broadcast %239 : vector<1x256xf32> to vector<8x256xf32>
    %241 = arith.mulf %238, %240 : vector<8x256xf32>
    %242 = vector.extract_strided_slice %199 {offsets = [0, 17], sizes = [8, 239], strides = [1, 1]} : vector<8x256xf32> to vector<8x239xf32>
    %243 = vector.extract_strided_slice %199 {offsets = [0, 0], sizes = [8, 17], strides = [1, 1]} : vector<8x256xf32> to vector<8x17xf32>
    %244 = tpu.concatenate %242, %243 in 1 : vector<8x239xf32>, vector<8x17xf32> -> vector<8x256xf32>
    %245 = vector.extract_strided_slice %198 {offsets = [8, 0], sizes = [1, 256], strides = [1, 1]} : vector<9x256xf32> to vector<1x256xf32>
    %246 = vector.broadcast %245 : vector<1x256xf32> to vector<8x256xf32>
    %247 = arith.mulf %244, %246 : vector<8x256xf32>
    %248 = tpu.concatenate %205, %211, %217, %223, %199, %229, %235, %241, %247 in 0 : vector<8x256xf32>, vector<8x256xf32>, vector<8x256xf32>, vector<8x256xf32>, vector<8x256xf32>, vector<8x256xf32>, vector<8x256xf32>, vector<8x256xf32>, vector<8x256xf32> -> vector<72x256xf32>
    %cst_43 = arith.constant dense<0.000000e+00> : vector<8x256xf32>
    %249 = tpu.matmul %196, %248, %cst_43 {dimension_numbers = #tpu.dot_dimension_numbers<[1], [0], [0], [1], [0, 0, 1, 1], [], []>} : vector<8x72xf32>, vector<72x256xf32>, vector<8x256xf32> -> vector<8x256xf32>
    %250 = vector.broadcast %197 : vector<8x1xf32> to vector<8x256xf32>
    %251 = arith.addf %249, %250 : vector<8x256xf32>
    %252 = vector.extract_strided_slice %251 {offsets = [0, 0], sizes = [4, 256], strides = [1, 1]} : vector<8x256xf32> to vector<4x256xf32>
    %cst_44 = arith.constant 5.000000e-01 : f32
    %253 = vector.broadcast %cst_44 : f32 to vector<4x256xf32>
    %254 = arith.mulf %253, %252 : vector<4x256xf32>
    %255 = math.tanh %254 : vector<4x256xf32>
    %cst_45 = arith.constant 1.000000e+00 : f32
    %256 = vector.broadcast %cst_45 : f32 to vector<4x256xf32>
    %257 = arith.addf %255, %256 : vector<4x256xf32>
    %cst_46 = arith.constant 5.000000e-01 : f32
    %258 = vector.broadcast %cst_46 : f32 to vector<4x256xf32>
    %259 = arith.mulf %258, %257 : vector<4x256xf32>
    %c0_47 = arith.constant 0 : index
    %c0_48 = arith.constant 0 : index
    %c0_49 = arith.constant 0 : index
    %260 = vector.load %arg18[%c0_47, %c0_48, %c0_49] : memref<1x4x256xf32, #tpu.memory_space<vmem>>, vector<1x4x256xf32>
    %261 = vector.shape_cast %260 : vector<1x4x256xf32> to vector<4x256xf32>
    %262 = vector.shape_cast %259 : vector<4x256xf32> to vector<1x4x256xf32>
    tpu.vector_store %arg18[%c0_47, %c0_48, %c0_49], %262 {strides = array<i32>} : memref<1x4x256xf32, #tpu.memory_space<vmem>>, vector<1x4x256xf32>,
    return
  }
  func.func @transform_0(%arg0: i32) -> (i32, i32, i32) {
    %c0_i32 = arith.constant 0 : i32
    %c0_i32_0 = arith.constant 0 : i32
    %c0_i32_1 = arith.constant 0 : i32
    return %arg0, %c0_i32, %c0_i32_0 : i32, i32, i32
  }
  func.func @transform_1(%arg0: i32) -> (i32, i32) {
    %c0_i32 = arith.constant 0 : i32
    %c0_i32_0 = arith.constant 0 : i32
    %c0_i32_1 = arith.constant 0 : i32
    return %c0_i32, %c0_i32_0 : i32, i32
  }
  func.func @transform_2(%arg0: i32) -> (i32, i32) {
    %c0_i32 = arith.constant 0 : i32
    %c0_i32_0 = arith.constant 0 : i32
    %c0_i32_1 = arith.constant 0 : i32
    return %c0_i32, %c0_i32_0 : i32, i32
  }
  func.func @transform_3(%arg0: i32) -> (i32, i32) {
    %c0_i32 = arith.constant 0 : i32
    %c0_i32_0 = arith.constant 0 : i32
    %c0_i32_1 = arith.constant 0 : i32
    return %c0_i32, %c0_i32_0 : i32, i32
  }
  func.func @transform_4(%arg0: i32) -> (i32, i32) {
    %c0_i32 = arith.constant 0 : i32
    %c0_i32_0 = arith.constant 0 : i32
    %c0_i32_1 = arith.constant 0 : i32
    return %c0_i32, %c0_i32_0 : i32, i32
  }
  func.func @transform_5(%arg0: i32) -> (i32, i32) {
    %c0_i32 = arith.constant 0 : i32
    %c0_i32_0 = arith.constant 0 : i32
    %c0_i32_1 = arith.constant 0 : i32
    return %c0_i32, %c0_i32_0 : i32, i32
  }
  func.func @transform_6(%arg0: i32) -> (i32, i32) {
    %c0_i32 = arith.constant 0 : i32
    %c0_i32_0 = arith.constant 0 : i32
    %c0_i32_1 = arith.constant 0 : i32
    return %c0_i32, %c0_i32_0 : i32, i32
  }
  func.func @transform_7(%arg0: i32) -> (i32, i32) {
    %c0_i32 = arith.constant 0 : i32
    %c0_i32_0 = arith.constant 0 : i32
    %c0_i32_1 = arith.constant 0 : i32
    return %c0_i32, %c0_i32_0 : i32, i32
  }
  func.func @transform_8(%arg0: i32) -> (i32, i32) {
    %c0_i32 = arith.constant 0 : i32
    %c0_i32_0 = arith.constant 0 : i32
    %c0_i32_1 = arith.constant 0 : i32
    return %c0_i32, %c0_i32_0 : i32, i32
  }
  func.func @transform_9(%arg0: i32) -> (i32, i32) {
    %c0_i32 = arith.constant 0 : i32
    %c0_i32_0 = arith.constant 0 : i32
    %c0_i32_1 = arith.constant 0 : i32
    return %c0_i32, %c0_i32_0 : i32, i32
  }
  func.func @transform_10(%arg0: i32) -> (i32, i32) {
    %c0_i32 = arith.constant 0 : i32
    %c0_i32_0 = arith.constant 0 : i32
    %c0_i32_1 = arith.constant 0 : i32
    return %c0_i32, %c0_i32_0 : i32, i32
  }
  func.func @transform_11(%arg0: i32) -> (i32, i32) {
    %c0_i32 = arith.constant 0 : i32
    %c0_i32_0 = arith.constant 0 : i32
    %c0_i32_1 = arith.constant 0 : i32
    return %c0_i32, %c0_i32_0 : i32, i32
  }
  func.func @transform_12(%arg0: i32) -> (i32, i32) {
    %c0_i32 = arith.constant 0 : i32
    %c0_i32_0 = arith.constant 0 : i32
    %c0_i32_1 = arith.constant 0 : i32
    return %c0_i32, %c0_i32_0 : i32, i32
  }
  func.func @transform_13(%arg0: i32) -> (i32, i32) {
    %c0_i32 = arith.constant 0 : i32
    %c0_i32_0 = arith.constant 0 : i32
    %c0_i32_1 = arith.constant 0 : i32
    return %c0_i32, %c0_i32_0 : i32, i32
  }
  func.func @transform_14(%arg0: i32) -> (i32, i32) {
    %c0_i32 = arith.constant 0 : i32
    %c0_i32_0 = arith.constant 0 : i32
    %c0_i32_1 = arith.constant 0 : i32
    return %c0_i32, %c0_i32_0 : i32, i32
  }
  func.func @transform_15(%arg0: i32) -> (i32, i32) {
    %c0_i32 = arith.constant 0 : i32
    %c0_i32_0 = arith.constant 0 : i32
    %c0_i32_1 = arith.constant 0 : i32
    return %c0_i32, %c0_i32_0 : i32, i32
  }
  func.func @transform_16(%arg0: i32) -> (i32, i32) {
    %c0_i32 = arith.constant 0 : i32
    %c0_i32_0 = arith.constant 0 : i32
    %c0_i32_1 = arith.constant 0 : i32
    return %c0_i32, %c0_i32_0 : i32, i32
  }
  func.func @transform_17(%arg0: i32) -> (i32, i32, i32) {
    %c0_i32 = arith.constant 0 : i32
    %c0_i32_0 = arith.constant 0 : i32
    %c0_i32_1 = arith.constant 0 : i32
    return %arg0, %c0_i32, %c0_i32_0 : i32, i32, i32
  }
}

</mosaic_0001>

<llo_original>
// kernel: conv_autoencoder_forward.1
$region0: #{conv_autoencoder_forward.1}
  #allocation0 [shape = 'u32[]', space=smem, size = 0x4, offset = 0x4, fixed_abs, tag = 'smem constant byte address 0x4 - core index']
  #allocation1 [shape = 'u32[144,128]{1,0:T(1,128)}', space=vmem, size = 0x12000, scoped, tag = 'internal scratch']
  %s0 = inlined_call_operand.vmem [shape: f32[2,8,256], index: 0, kind: input, shape index: {}]
  %s1 = inlined_call_operand.vmem [shape: f32[8,72], index: 1, kind: input, shape index: {}]
  %s2 = inlined_call_operand.vmem [shape: f32[8,1], index: 2, kind: input, shape index: {}]
  %s3 = inlined_call_operand.vmem [shape: f32[9,256], index: 3, kind: input, shape index: {}, may-alias: {3,16}]
  %s4 = inlined_call_operand.vmem [shape: f32[256,64], index: 4, kind: input, shape index: {}]
  %s5 = inlined_call_operand.vmem [shape: f32[16,72], index: 5, kind: input, shape index: {}]
  %s6 = inlined_call_operand.vmem [shape: f32[16,1], index: 6, kind: input, shape index: {}]
  %s7 = inlined_call_operand.vmem [shape: f32[9,64], index: 7, kind: input, shape index: {}, may-alias: {7,12}]
  %s8 = inlined_call_operand.vmem [shape: f32[64,16], index: 8, kind: input, shape index: {}]
  %s9 = inlined_call_operand.vmem [shape: f32[16,64], index: 9, kind: input, shape index: {}]
  %s10 = inlined_call_operand.vmem [shape: f32[8,144], index: 10, kind: input, shape index: {}]
  %s11 = inlined_call_operand.vmem [shape: f32[8,1], index: 11, kind: input, shape index: {}]
  %s12 = inlined_call_operand.vmem [shape: f32[9,64], index: 12, kind: input, shape index: {}, may-alias: {7,12}]
  %s13 = inlined_call_operand.vmem [shape: f32[64,256], index: 13, kind: input, shape index: {}]
  %s14 = inlined_call_operand.vmem [shape: f32[8,72], index: 14, kind: input, shape index: {}]
  %s15 = inlined_call_operand.vmem [shape: f32[8,1], index: 15, kind: input, shape index: {}]
  %s16 = inlined_call_operand.vmem [shape: f32[9,256], index: 16, kind: input, shape index: {}, may-alias: {3,16}]
  %s17 = inlined_call_operand.vmem [shape: f32[2,4,256], index: 17, kind: output, shape index: {}]
  %s18 = sld [smem:[#allocation0]]
  $region101: #{conv_autoencoder_forward.1} parent=0
    _
  %s20 = ssub.s32 1, %s18
  %s21 = scalar_select 0, %s20, %s18
  loop: start=0, step=1, limit=4
  $region2: #{conv_autoencoder_forward.1} parent=0 // loop_pre_header
    _
  $region3: #{conv_autoencoder_forward.1} parent=0 // loop_header
    %s23 = sphi 0, %s27
    %p24 = scmp.ge.s32.totalorder %s23, 4
    %s33 = sphi 0, %s35
    %s36 = sphi 0, %s33
    %s37 = sphi 0, %s36
    %s53 = sphi 0, %s37
    %s57 = sphi 0, %s57
    %s59 = sphi 0, %s57
    %s60 = sphi 0, %s59
    %s74 = sphi 0, %s60
    %s78 = sphi 0, %s78
    %s80 = sphi 0, %s78
    %s81 = sphi 0, %s80
    %s95 = sphi 0, %s81
    %s99 = sphi 0, %s99
    %s101 = sphi 0, %s99
    %s102 = sphi 0, %s101
    %s116 = sphi 0, %s102
    %s120 = sphi 0, %s120
    %s122 = sphi 0, %s120
    %s123 = sphi 0, %s122
    %s137 = sphi 0, %s123
    %s141 = sphi 0, %s141
    %s143 = sphi 0, %s141
    %s144 = sphi 0, %s143
    %s158 = sphi 0, %s144
    %s162 = sphi 0, %s162
    %s164 = sphi 0, %s162
    %s165 = sphi 0, %s164
    %s179 = sphi 0, %s165
    %s183 = sphi 0, %s183
    %s185 = sphi 0, %s183
    %s186 = sphi 0, %s185
    %s200 = sphi 0, %s186
    %s204 = sphi 0, %s204
    %s206 = sphi 0, %s204
    %s207 = sphi 0, %s206
    %s221 = sphi 0, %s207
    %s225 = sphi 0, %s225
    %s227 = sphi 0, %s225
    %s228 = sphi 0, %s227
    %s242 = sphi 0, %s228
    %s246 = sphi 0, %s246
    %s248 = sphi 0, %s246
    %s249 = sphi 0, %s248
    %s263 = sphi 0, %s249
    %s267 = sphi 0, %s267
    %s269 = sphi 0, %s267
    %s270 = sphi 0, %s269
    %s284 = sphi 0, %s270
    %s288 = sphi 0, %s288
    %s290 = sphi 0, %s288
    %s291 = sphi 0, %s290
    %s305 = sphi 0, %s291
    %s309 = sphi 0, %s309
    %s311 = sphi 0, %s309
    %s312 = sphi 0, %s311
    %s326 = sphi 0, %s312
    %s330 = sphi 0, %s330
    %s332 = sphi 0, %s330
    %s333 = sphi 0, %s332
    %s347 = sphi 0, %s333
    %s351 = sphi 0, %s351
    %s353 = sphi 0, %s351
    %s354 = sphi 0, %s353
    %s368 = sphi 0, %s354
    %s372 = sphi 0, %s372
    %s374 = sphi 0, %s372
    %s375 = sphi 0, %s374
    %s389 = sphi 0, %s375
    %s395 = sphi 0, %s397
    %s398 = sphi 0, %s395
    %s399 = sphi 0, %s398
    %s415 = sphi 0, %s399
  $region4: #{conv_autoencoder_forward.1} parent=0 // loop_header_branch
    %26 = sbr.rel (%p24) target = $region8
  $region5: #{conv_autoencoder_forward.1} parent=0 // loop_body
    %s28 = ssub.s32 %s23, 1
    %s29 = ssub.s32 %s23, 2
    %s30 = sadd.s32 %s23, 1
    %s31 = ssub.s32 %s23, %s30
    %p32 = scmp.eq.s32.totalorder %s31, 0
    %s34 = sadd.s32 %s33, 1
    %s35 = scalar_select %p32, %s33, %s34
    %p38 = pneg %p32
    %p39 = scmp.eq.s32.totalorder %s23, 1
    %p40 = por %p38, %p39
    %p41 = scmp.ne.s32.totalorder %s33, %s36
    %p42 = scmp.eq.s32.totalorder %s23, 0
    %p43 = por %p41, %p42
    %p44 = scmp.ne.s32.totalorder %s33, %s36
    %p45 = scmp.eq.s32.totalorder %s28, 1
    %p46 = por %p44, %p45
    %p47 = scmp.ne.s32.totalorder %s36, %s37
    %p48 = scmp.eq.s32.totalorder %s28, 0
    %p49 = por %p47, %p48
    %p50 = scmp.ne.s32.totalorder %s36, %s37
    %p51 = scmp.eq.s32.totalorder %s29, 1
    %p52 = por %p50, %p51
    %p54 = scmp.ne.s32.totalorder %s37, %s53
    %p55 = scmp.eq.s32.totalorder %s29, 0
    %p56 = por %p54, %p55
    %s58 = sadd.s32 %s57, 1
    %p61 = scmp.eq.s32.totalorder %s23, 1
    %p62 = scmp.ne.s32.totalorder %s57, %s59
    %p63 = scmp.eq.s32.totalorder %s23, 0
    %p64 = por %p62, %p63
    %p65 = scmp.ne.s32.totalorder %s57, %s59
    %p66 = scmp.eq.s32.totalorder %s28, 1
    %p67 = por %p65, %p66
    %p68 = scmp.ne.s32.totalorder %s59, %s60
    %p69 = scmp.eq.s32.totalorder %s28, 0
    %p70 = por %p68, %p69
    %p71 = scmp.ne.s32.totalorder %s59, %s60
    %p72 = scmp.eq.s32.totalorder %s29, 1
    %p73 = por %p71, %p72
    %p75 = scmp.ne.s32.totalorder %s60, %s74
    %p76 = scmp.eq.s32.totalorder %s29, 0
    %p77 = por %p75, %p76
    %s79 = sadd.s32 %s78, 1
    %p82 = scmp.eq.s32.totalorder %s23, 1
    %p83 = scmp.ne.s32.totalorder %s78, %s80
    %p84 = scmp.eq.s32.totalorder %s23, 0
    %p85 = por %p83, %p84
    %p86 = scmp.ne.s32.totalorder %s78, %s80
    %p87 = scmp.eq.s32.totalorder %s28, 1
    %p88 = por %p86, %p87
    %p89 = scmp.ne.s32.totalorder %s80, %s81
    %p90 = scmp.eq.s32.totalorder %s28, 0
    %p91 = por %p89, %p90
    %p92 = scmp.ne.s32.totalorder %s80, %s81
    %p93 = scmp.eq.s32.totalorder %s29, 1
    %p94 = por %p92, %p93
    %p96 = scmp.ne.s32.totalorder %s81, %s95
    %p97 = scmp.eq.s32.totalorder %s29, 0
    %p98 = por %p96, %p97
    %s100 = sadd.s32 %s99, 1
    %p103 = scmp.eq.s32.totalorder %s23, 1
    %p104 = scmp.ne.s32.totalorder %s99, %s101
    %p105 = scmp.eq.s32.totalorder %s23, 0
    %p106 = por %p104, %p105
    %p107 = scmp.ne.s32.totalorder %s99, %s101
    %p108 = scmp.eq.s32.totalorder %s28, 1
    %p109 = por %p107, %p108
    %p110 = scmp.ne.s32.totalorder %s101, %s102
    %p111 = scmp.eq.s32.totalorder %s28, 0
    %p112 = por %p110, %p111
    %p113 = scmp.ne.s32.totalorder %s101, %s102
    %p114 = scmp.eq.s32.totalorder %s29, 1
    %p115 = por %p113, %p114
    %p117 = scmp.ne.s32.totalorder %s102, %s116
    %p118 = scmp.eq.s32.totalorder %s29, 0
    %p119 = por %p117, %p118
    %s121 = sadd.s32 %s120, 1
    %p124 = scmp.eq.s32.totalorder %s23, 1
    %p125 = scmp.ne.s32.totalorder %s120, %s122
    %p126 = scmp.eq.s32.totalorder %s23, 0
    %p127 = por %p125, %p126
    %p128 = scmp.ne.s32.totalorder %s120, %s122
    %p129 = scmp.eq.s32.totalorder %s28, 1
    %p130 = por %p128, %p129
    %p131 = scmp.ne.s32.totalorder %s122, %s123
    %p132 = scmp.eq.s32.totalorder %s28, 0
    %p133 = por %p131, %p132
    %p134 = scmp.ne.s32.totalorder %s122, %s123
    %p135 = scmp.eq.s32.totalorder %s29, 1
    %p136 = por %p134, %p135
    %p138 = scmp.ne.s32.totalorder %s123, %s137
    %p139 = scmp.eq.s32.totalorder %s29, 0
    %p140 = por %p138, %p139
    %s142 = sadd.s32 %s141, 1
    %p145 = scmp.eq.s32.totalorder %s23, 1
    %p146 = scmp.ne.s32.totalorder %s141, %s143
    %p147 = scmp.eq.s32.totalorder %s23, 0
    %p148 = por %p146, %p147
    %p149 = scmp.ne.s32.totalorder %s141, %s143
    %p150 = scmp.eq.s32.totalorder %s28, 1
    %p151 = por %p149, %p150
    %p152 = scmp.ne.s32.totalorder %s143, %s144
    %p153 = scmp.eq.s32.totalorder %s28, 0
    %p154 = por %p152, %p153
    %p155 = scmp.ne.s32.totalorder %s143, %s144
    %p156 = scmp.eq.s32.totalorder %s29, 1
    %p157 = por %p155, %p156
    %p159 = scmp.ne.s32.totalorder %s144, %s158
    %p160 = scmp.eq.s32.totalorder %s29, 0
    %p161 = por %p159, %p160
    %s163 = sadd.s32 %s162, 1
    %p166 = scmp.eq.s32.totalorder %s23, 1
    %p167 = scmp.ne.s32.totalorder %s162, %s164
    %p168 = scmp.eq.s32.totalorder %s23, 0
    %p169 = por %p167, %p168
    %p170 = scmp.ne.s32.totalorder %s162, %s164
    %p171 = scmp.eq.s32.totalorder %s28, 1
    %p172 = por %p170, %p171
    %p173 = scmp.ne.s32.totalorder %s164, %s165
    %p174 = scmp.eq.s32.totalorder %s28, 0
    %p175 = por %p173, %p174
    %p176 = scmp.ne.s32.totalorder %s164, %s165
    %p177 = scmp.eq.s32.totalorder %s29, 1
    %p178 = por %p176, %p177
    %p180 = scmp.ne.s32.totalorder %s165, %s179
    %p181 = scmp.eq.s32.totalorder %s29, 0
    %p182 = por %p180, %p181
    %s184 = sadd.s32 %s183, 1
    %p187 = scmp.eq.s32.totalorder %s23, 1
    %p188 = scmp.ne.s32.totalorder %s183, %s185
    %p189 = scmp.eq.s32.totalorder %s23, 0
    %p190 = por %p188, %p189
    %p191 = scmp.ne.s32.totalorder %s183, %s185
    %p192 = scmp.eq.s32.totalorder %s28, 1
    %p193 = por %p191, %p192
    %p194 = scmp.ne.s32.totalorder %s185, %s186
    %p195 = scmp.eq.s32.totalorder %s28, 0
    %p196 = por %p194, %p195
    %p197 = scmp.ne.s32.totalorder %s185, %s186
    %p198 = scmp.eq.s32.totalorder %s29, 1
    %p199 = por %p197, %p198
    %p201 = scmp.ne.s32.totalorder %s186, %s200
    %p202 = scmp.eq.s32.totalorder %s29, 0
    %p203 = por %p201, %p202
    %s205 = sadd.s32 %s204, 1
    %p208 = scmp.eq.s32.totalorder %s23, 1
    %p209 = scmp.ne.s32.totalorder %s204, %s206
    %p210 = scmp.eq.s32.totalorder %s23, 0
    %p211 = por %p209, %p210
    %p212 = scmp.ne.s32.totalorder %s204, %s206
    %p213 = scmp.eq.s32.totalorder %s28, 1
    %p214 = por %p212, %p213
    %p215 = scmp.ne.s32.totalorder %s206, %s207
    %p216 = scmp.eq.s32.totalorder %s28, 0
    %p217 = por %p215, %p216
    %p218 = scmp.ne.s32.totalorder %s206, %s207
    %p219 = scmp.eq.s32.totalorder %s29, 1
    %p220 = por %p218, %p219
    %p222 = scmp.ne.s32.totalorder %s207, %s221
    %p223 = scmp.eq.s32.totalorder %s29, 0
    %p224 = por %p222, %p223
    %s226 = sadd.s32 %s225, 1
    %p229 = scmp.eq.s32.totalorder %s23, 1
    %p230 = scmp.ne.s32.totalorder %s225, %s227
    %p231 = scmp.eq.s32.totalorder %s23, 0
    %p232 = por %p230, %p231
    %p233 = scmp.ne.s32.totalorder %s225, %s227
    %p234 = scmp.eq.s32.totalorder %s28, 1
    %p235 = por %p233, %p234
    %p236 = scmp.ne.s32.totalorder %s227, %s228
    %p237 = scmp.eq.s32.totalorder %s28, 0
    %p238 = por %p236, %p237
    %p239 = scmp.ne.s32.totalorder %s227, %s228
    %p240 = scmp.eq.s32.totalorder %s29, 1
    %p241 = por %p239, %p240
    %p243 = scmp.ne.s32.totalorder %s228, %s242
    %p244 = scmp.eq.s32.totalorder %s29, 0
    %p245 = por %p243, %p244
    %s247 = sadd.s32 %s246, 1
    %p250 = scmp.eq.s32.totalorder %s23, 1
    %p251 = scmp.ne.s32.totalorder %s246, %s248
    %p252 = scmp.eq.s32.totalorder %s23, 0
    %p253 = por %p251, %p252
    %p254 = scmp.ne.s32.totalorder %s246, %s248
    %p255 = scmp.eq.s32.totalorder %s28, 1
    %p256 = por %p254, %p255
    %p257 = scmp.ne.s32.totalorder %s248, %s249
    %p258 = scmp.eq.s32.totalorder %s28, 0
    %p259 = por %p257, %p258
    %p260 = scmp.ne.s32.totalorder %s248, %s249
    %p261 = scmp.eq.s32.totalorder %s29, 1
    %p262 = por %p260, %p261
    %p264 = scmp.ne.s32.totalorder %s249, %s263
    %p265 = scmp.eq.s32.totalorder %s29, 0
    %p266 = por %p264, %p265
    %s268 = sadd.s32 %s267, 1
    %p271 = scmp.eq.s32.totalorder %s23, 1
    %p272 = scmp.ne.s32.totalorder %s267, %s269
    %p273 = scmp.eq.s32.totalorder %s23, 0
    %p274 = por %p272, %p273
    %p275 = scmp.ne.s32.totalorder %s267, %s269
    %p276 = scmp.eq.s32.totalorder %s28, 1
    %p277 = por %p275, %p276
    %p278 = scmp.ne.s32.totalorder %s269, %s270
    %p279 = scmp.eq.s32.totalorder %s28, 0
    %p280 = por %p278, %p279
    %p281 = scmp.ne.s32.totalorder %s269, %s270
    %p282 = scmp.eq.s32.totalorder %s29, 1
    %p283 = por %p281, %p282
    %p285 = scmp.ne.s32.totalorder %s270, %s284
    %p286 = scmp.eq.s32.totalorder %s29, 0
    %p287 = por %p285, %p286
    %s289 = sadd.s32 %s288, 1
    %p292 = scmp.eq.s32.totalorder %s23, 1
    %p293 = scmp.ne.s32.totalorder %s288, %s290
    %p294 = scmp.eq.s32.totalorder %s23, 0
    %p295 = por %p293, %p294
    %p296 = scmp.ne.s32.totalorder %s288, %s290
    %p297 = scmp.eq.s32.totalorder %s28, 1
    %p298 = por %p296, %p297
    %p299 = scmp.ne.s32.totalorder %s290, %s291
    %p300 = scmp.eq.s32.totalorder %s28, 0
    %p301 = por %p299, %p300
    %p302 = scmp.ne.s32.totalorder %s290, %s291
    %p303 = scmp.eq.s32.totalorder %s29, 1
    %p304 = por %p302, %p303
    %p306 = scmp.ne.s32.totalorder %s291, %s305
    %p307 = scmp.eq.s32.totalorder %s29, 0
    %p308 = por %p306, %p307
    %s310 = sadd.s32 %s309, 1
    %p313 = scmp.eq.s32.totalorder %s23, 1
    %p314 = scmp.ne.s32.totalorder %s309, %s311
    %p315 = scmp.eq.s32.totalorder %s23, 0
    %p316 = por %p314, %p315
    %p317 = scmp.ne.s32.totalorder %s309, %s311
    %p318 = scmp.eq.s32.totalorder %s28, 1
    %p319 = por %p317, %p318
    %p320 = scmp.ne.s32.totalorder %s311, %s312
    %p321 = scmp.eq.s32.totalorder %s28, 0
    %p322 = por %p320, %p321
    %p323 = scmp.ne.s32.totalorder %s311, %s312
    %p324 = scmp.eq.s32.totalorder %s29, 1
    %p325 = por %p323, %p324
    %p327 = scmp.ne.s32.totalorder %s312, %s326
    %p328 = scmp.eq.s32.totalorder %s29, 0
    %p329 = por %p327, %p328
    %s331 = sadd.s32 %s330, 1
    %p334 = scmp.eq.s32.totalorder %s23, 1
    %p335 = scmp.ne.s32.totalorder %s330, %s332
    %p336 = scmp.eq.s32.totalorder %s23, 0
    %p337 = por %p335, %p336
    %p338 = scmp.ne.s32.totalorder %s330, %s332
    %p339 = scmp.eq.s32.totalorder %s28, 1
    %p340 = por %p338, %p339
    %p341 = scmp.ne.s32.totalorder %s332, %s333
    %p342 = scmp.eq.s32.totalorder %s28, 0
    %p343 = por %p341, %p342
    %p344 = scmp.ne.s32.totalorder %s332, %s333
    %p345 = scmp.eq.s32.totalorder %s29, 1
    %p346 = por %p344, %p345
    %p348 = scmp.ne.s32.totalorder %s333, %s347
    %p349 = scmp.eq.s32.totalorder %s29, 0
    %p350 = por %p348, %p349
    %s352 = sadd.s32 %s351, 1
    %p355 = scmp.eq.s32.totalorder %s23, 1
    %p356 = scmp.ne.s32.totalorder %s351, %s353
    %p357 = scmp.eq.s32.totalorder %s23, 0
    %p358 = por %p356, %p357
    %p359 = scmp.ne.s32.totalorder %s351, %s353
    %p360 = scmp.eq.s32.totalorder %s28, 1
    %p361 = por %p359, %p360
    %p362 = scmp.ne.s32.totalorder %s353, %s354
    %p363 = scmp.eq.s32.totalorder %s28, 0
    %p364 = por %p362, %p363
    %p365 = scmp.ne.s32.totalorder %s353, %s354
    %p366 = scmp.eq.s32.totalorder %s29, 1
    %p367 = por %p365, %p366
    %p369 = scmp.ne.s32.totalorder %s354, %s368
    %p370 = scmp.eq.s32.totalorder %s29, 0
    %p371 = por %p369, %p370
    %s373 = sadd.s32 %s372, 1
    %p376 = scmp.eq.s32.totalorder %s23, 1
    %p377 = scmp.ne.s32.totalorder %s372, %s374
    %p378 = scmp.eq.s32.totalorder %s23, 0
    %p379 = por %p377, %p378
    %p380 = scmp.ne.s32.totalorder %s372, %s374
    %p381 = scmp.eq.s32.totalorder %s28, 1
    %p382 = por %p380, %p381
    %p383 = scmp.ne.s32.totalorder %s374, %s375
    %p384 = scmp.eq.s32.totalorder %s28, 0
    %p385 = por %p383, %p384
    %p386 = scmp.ne.s32.totalorder %s374, %s375
    %p387 = scmp.eq.s32.totalorder %s29, 1
    %p388 = por %p386, %p387
    %p390 = scmp.ne.s32.totalorder %s375, %s389
    %p391 = scmp.eq.s32.totalorder %s29, 0
    %p392 = por %p390, %p391
    %s393 = ssub.s32 %s23, %s30
    %p394 = scmp.eq.s32.totalorder %s393, 0
    %s396 = sadd.s32 %s395, 1
    %s397 = scalar_select %p394, %s395, %s396
    %p400 = pneg %p394
    %p401 = scmp.eq.s32.totalorder %s23, 1
    %p402 = por %p400, %p401
    %p403 = scmp.ne.s32.totalorder %s395, %s398
    %p404 = scmp.eq.s32.totalorder %s23, 0
    %p405 = por %p403, %p404
    %p406 = scmp.ne.s32.totalorder %s395, %s398
    %p407 = scmp.eq.s32.totalorder %s28, 1
    %p408 = por %p406, %p407
    %p409 = scmp.ne.s32.totalorder %s398, %s399
    %p410 = scmp.eq.s32.totalorder %s28, 0
    %p411 = por %p409, %p410
    %p412 = scmp.ne.s32.totalorder %s398, %s399
    %p413 = scmp.eq.s32.totalorder %s29, 1
    %p414 = por %p412, %p413
    %p416 = scmp.ne.s32.totalorder %s399, %s415
    %p417 = scmp.eq.s32.totalorder %s29, 0
    %p418 = por %p416, %p417
    %p419 = scmp.le.s32.totalorder 1, %s23
    %p420 = scmp.lt.s32.totalorder %s23, 3
    %p421 = pnand %p419, %p420
    %p422 = pneg %p421
    // Predicated region
    $region9: #{conv_autoencoder_forward.1} parent=5 // pred_check
      _
    $region10: #{conv_autoencoder_forward.1} parent=5 // pred_check_branch
      %424 = sbr.rel (%p421) target = $region12
    $region11: #{conv_autoencoder_forward.1} parent=5 // pred_region
      %s425 = ssub.s32 %s23, 1
      // Predicated region
      $region13: #{conv_autoencoder_forward.1} parent=11 // pred_check
        %p426 = pneg %p70
      $region14: #{conv_autoencoder_forward.1} parent=11 // pred_check_branch
        %428 = sbr.rel (%p426) target = $region16
      $region15: #{conv_autoencoder_forward.1} parent=11 // pred_region
        _
      $region16: #{conv_autoencoder_forward.1} parent=11 // pred_fallthru
        _
      // Predicated region
      $region17: #{conv_autoencoder_forward.1} parent=11 // pred_check
        %p429 = pneg %p91
      $region18: #{conv_autoencoder_forward.1} parent=11 // pred_check_branch
        %431 = sbr.rel (%p429) target = $region20
      $region19: #{conv_autoencoder_forward.1} parent=11 // pred_region
        _
      $region20: #{conv_autoencoder_forward.1} parent=11 // pred_fallthru
        _
      // Predicated region
      $region21: #{conv_autoencoder_forward.1} parent=11 // pred_check
        %p432 = pneg %p112
      $region22: #{conv_autoencoder_forward.1} parent=11 // pred_check_branch
        %434 = sbr.rel (%p432) target = $region24
      $region23: #{conv_autoencoder_forward.1} parent=11 // pred_region
        _
      $region24: #{conv_autoencoder_forward.1} parent=11 // pred_fallthru
        _
      // Predicated region
      $region25: #{conv_autoencoder_forward.1} parent=11 // pred_check
        %p435 = pneg %p133
      $region26: #{conv_autoencoder_forward.1} parent=11 // pred_check_branch
        %437 = sbr.rel (%p435) target = $region28
      $region27: #{conv_autoencoder_forward.1} parent=11 // pred_region
        _
      $region28: #{conv_autoencoder_forward.1} parent=11 // pred_fallthru
        _
      // Predicated region
      $region29: #{conv_autoencoder_forward.1} parent=11 // pred_check
        %p438 = pneg %p154
      $region30: #{conv_autoencoder_forward.1} parent=11 // pred_check_branch
        %440 = sbr.rel (%p438) target = $region32
      $region31: #{conv_autoencoder_forward.1} parent=11 // pred_region
        _
      $region32: #{conv_autoencoder_forward.1} parent=11 // pred_fallthru
        _
      // Predicated region
      $region33: #{conv_autoencoder_forward.1} parent=11 // pred_check
        %p441 = pneg %p175
      $region34: #{conv_autoencoder_forward.1} parent=11 // pred_check_branch
        %443 = sbr.rel (%p441) target = $region36
      $region35: #{conv_autoencoder_forward.1} parent=11 // pred_region
        _
      $region36: #{conv_autoencoder_forward.1} parent=11 // pred_fallthru
        _
      // Predicated region
      $region37: #{conv_autoencoder_forward.1} parent=11 // pred_check
        %p444 = pneg %p196
      $region38: #{conv_autoencoder_forward.1} parent=11 // pred_check_branch
        %446 = sbr.rel (%p444) target = $region40
      $region39: #{conv_autoencoder_forward.1} parent=11 // pred_region
        _
      $region40: #{conv_autoencoder_forward.1} parent=11 // pred_fallthru
        _
      // Predicated region
      $region41: #{conv_autoencoder_forward.1} parent=11 // pred_check
        %p447 = pneg %p217
      $region42: #{conv_autoencoder_forward.1} parent=11 // pred_check_branch
        %449 = sbr.rel (%p447) target = $region44
      $region43: #{conv_autoencoder_forward.1} parent=11 // pred_region
        _
      $region44: #{conv_autoencoder_forward.1} parent=11 // pred_fallthru
        _
      // Predicated region
      $region45: #{conv_autoencoder_forward.1} parent=11 // pred_check
        %p450 = pneg %p238
      $region46: #{conv_autoencoder_forward.1} parent=11 // pred_check_branch
        %452 = sbr.rel (%p450) target = $region48
      $region47: #{conv_autoencoder_forward.1} parent=11 // pred_region
        _
      $region48: #{conv_autoencoder_forward.1} parent=11 // pred_fallthru
        _
      // Predicated region
      $region49: #{conv_autoencoder_forward.1} parent=11 // pred_check
        %p453 = pneg %p259
      $region50: #{conv_autoencoder_forward.1} parent=11 // pred_check_branch
        %455 = sbr.rel (%p453) target = $region52
      $region51: #{conv_autoencoder_forward.1} parent=11 // pred_region
        _
      $region52: #{conv_autoencoder_forward.1} parent=11 // pred_fallthru
        _
      // Predicated region
      $region53: #{conv_autoencoder_forward.1} parent=11 // pred_check
        %p456 = pneg %p280
      $region54: #{conv_autoencoder_forward.1} parent=11 // pred_check_branch
        %458 = sbr.rel (%p456) target = $region56
      $region55: #{conv_autoencoder_forward.1} parent=11 // pred_region
        _
      $region56: #{conv_autoencoder_forward.1} parent=11 // pred_fallthru
        _
      // Predicated region
      $region57: #{conv_autoencoder_forward.1} parent=11 // pred_check
        %p459 = pneg %p301
      $region58: #{conv_autoencoder_forward.1} parent=11 // pred_check_branch
        %461 = sbr.rel (%p459) target = $region60
      $region59: #{conv_autoencoder_forward.1} parent=11 // pred_region
        _
      $region60: #{conv_autoencoder_forward.1} parent=11 // pred_fallthru
        _
      // Predicated region
      $region61: #{conv_autoencoder_forward.1} parent=11 // pred_check
        %p462 = pneg %p322
      $region62: #{conv_autoencoder_forward.1} parent=11 // pred_check_branch
        %464 = sbr.rel (%p462) target = $region64
      $region63: #{conv_autoencoder_forward.1} parent=11 // pred_region
        _
      $region64: #{conv_autoencoder_forward.1} parent=11 // pred_fallthru
        _
      // Predicated region
      $region65: #{conv_autoencoder_forward.1} parent=11 // pred_check
        %p465 = pneg %p343
      $region66: #{conv_autoencoder_forward.1} parent=11 // pred_check_branch
        %467 = sbr.rel (%p465) target = $region68
      $region67: #{conv_autoencoder_forward.1} parent=11 // pred_region
        _
      $region68: #{conv_autoencoder_forward.1} parent=11 // pred_fallthru
        _
      // Predicated region
      $region69: #{conv_autoencoder_forward.1} parent=11 // pred_check
        %p468 = pneg %p364
      $region70: #{conv_autoencoder_forward.1} parent=11 // pred_check_branch
        %470 = sbr.rel (%p468) target = $region72
      $region71: #{conv_autoencoder_forward.1} parent=11 // pred_region
        _
      $region72: #{conv_autoencoder_forward.1} parent=11 // pred_fallthru
        _
      // Predicated region
      $region73: #{conv_autoencoder_forward.1} parent=11 // pred_check
        %p471 = pneg %p385
      $region74: #{conv_autoencoder_forward.1} parent=11 // pred_check_branch
        %473 = sbr.rel (%p471) target = $region76
      $region75: #{conv_autoencoder_forward.1} parent=11 // pred_region
        _
      $region76: #{conv_autoencoder_forward.1} parent=11 // pred_fallthru
        _
    $region12: #{conv_autoencoder_forward.1} parent=5 // pred_fallthru
      _
    %p474 = scmp.lt.s32.totalorder %s23, 2
    // Predicated region
    $region77: #{conv_autoencoder_forward.1} parent=5 // pred_check
      %p475 = pneg %p474
    $region78: #{conv_autoencoder_forward.1} parent=5 // pred_check_branch
      %477 = sbr.rel (%p475) target = $region80
    $region79: #{conv_autoencoder_forward.1} parent=5 // pred_region
      // Predicated region
      $region81: #{conv_autoencoder_forward.1} parent=79 // pred_check
        %p478 = pneg %p43
      $region82: #{conv_autoencoder_forward.1} parent=79 // pred_check_branch
        %480 = sbr.rel (%p478) target = $region84
      $region83: #{conv_autoencoder_forward.1} parent=79 // pred_region
        %p481 = scmp.lt.s32.totalorder %s23, 1
        %s482 = scalar_select %p481, %s23, 1
        %s483 = smul.addr %s482, 2
        %s484 = smul.addr %s483, 8
        %s485 = scalar_lea.vmem %s0, %s484
      $region84: #{conv_autoencoder_forward.1} parent=79 // pred_fallthru
        _
    $region80: #{conv_autoencoder_forward.1} parent=5 // pred_fallthru
      _
    %p486 = scmp.le.s32.totalorder 1, %s23
    %p487 = scmp.lt.s32.totalorder %s23, 3
    %p488 = pnand %p486, %p487
    %p489 = pneg %p488
    // Predicated region
    $region85: #{conv_autoencoder_forward.1} parent=5 // pred_check
      _
    $region86: #{conv_autoencoder_forward.1} parent=5 // pred_check_branch
      %491 = sbr.rel (%p488) target = $region88
    $region87: #{conv_autoencoder_forward.1} parent=5 // pred_region
      %s492 = ssub.s32 %s23, 1
      %p493 = scmp.lt.s32.totalorder %s28, 1
      %s494 = scalar_select %p493, %s28, 1
      %s495 = smul.addr %s494, 2
      %s496 = smul.addr %s495, 8
      %s497 = scalar_lea.vmem %s0, %s496
      %p498 = pneg %p49
      %p499 = pneg %p46
      %p500 = pneg %p70
      %p501 = pneg %p67
      %p502 = pneg %p91
      %p503 = pneg %p88
      %p504 = pneg %p112
      %p505 = pneg %p109
      %p506 = pneg %p133
      %p507 = pneg %p130
      %p508 = pneg %p154
      %p509 = pneg %p151
      %p510 = pneg %p175
      %p511 = pneg %p172
      %p512 = pneg %p196
      %p513 = pneg %p193
      %p514 = pneg %p217
      %p515 = pneg %p214
      %p516 = pneg %p238
      %p517 = pneg %p235
      %p518 = pneg %p259
      %p519 = pneg %p256
      %p520 = pneg %p280
      %p521 = pneg %p277
      %p522 = pneg %p301
      %p523 = pneg %p298
      %p524 = pneg %p322
      %p525 = pneg %p319
      %p526 = pneg %p343
      %p527 = pneg %p340
      %p528 = pneg %p364
      %p529 = pneg %p361
      %p530 = pneg %p385
      %p531 = pneg %p382
      %p532 = pneg %p411
      %p533 = pneg %p408
      %p534 = scmp.lt.s32.totalorder %s28, 1
      %s535 = scalar_select %p534, %s28, 1
      %s536 = smul.addr %s535, 2
      %s537 = smul.addr %s536, 4
      %s538 = scalar_lea.vmem %s17, %s537
      %p539 = scmp.lt.s32.totalorder %s28, 1
      %s540 = scalar_select %p539, %s28, 1
      %s541 = smul.addr %s540, 2
      %s542 = smul.addr %s541, 8
      %s543 = scalar_lea.vmem %s0, %s542
      %p544 = scmp.lt.s32.totalorder %s28, 1
      %s545 = scalar_select %p544, %s28, 1
      %s546 = smul.addr %s545, 2
      %s547 = smul.addr %s546, 4
      %s548 = scalar_lea.vmem %s17, %s547
      %v549 = vld [vmem:[%s543] sm:$0xff]
      %v550 = vld [vmem:[%s543 + $0x8] sm:$0xff]
      %v551 = vld [vmem:[%s1] sm:$0xff]
      %v552 = vld [vmem:[%s2] sm:$0xff]
      %v553 = vld [vmem:[%s3] sm:$0xff]
      %v554 = vld [vmem:[%s3 + $0x8] sm:$0xff]
      %v555 = vld [vmem:[%s3 + $0x10] sm:$0x1]
      %v556 = vld [vmem:[%s3 + $0x18] sm:$0x1]
      %v557 = vld [vmem:[%s4] sm:$0xff]
      %v558 = vld [vmem:[%s4 + $0x8] sm:$0xff]
      %v559 = vld [vmem:[%s4 + $0x10] sm:$0xff]
      %v560 = vld [vmem:[%s4 + $0x18] sm:$0xff]
      %v561 = vld [vmem:[%s4 + $0x20] sm:$0xff]
      %v562 = vld [vmem:[%s4 + $0x28] sm:$0xff]
      %v563 = vld [vmem:[%s4 + $0x30] sm:$0xff]
      %v564 = vld [vmem:[%s4 + $0x38] sm:$0xff]
      %v565 = vld [vmem:[%s4 + $0x40] sm:$0xff]
      %v566 = vld [vmem:[%s4 + $0x48] sm:$0xff]
      %v567 = vld [vmem:[%s4 + $0x50] sm:$0xff]
      %v568 = vld [vmem:[%s4 + $0x58] sm:$0xff]
      %v569 = vld [vmem:[%s4 + $0x60] sm:$0xff]
      %v570 = vld [vmem:[%s4 + $0x68] sm:$0xff]
      %v571 = vld [vmem:[%s4 + $0x70] sm:$0xff]
      %v572 = vld [vmem:[%s4 + $0x78] sm:$0xff]
      %v573 = vld [vmem:[%s4 + $0x80] sm:$0xff]
      %v574 = vld [vmem:[%s4 + $0x88] sm:$0xff]
      %v575 = vld [vmem:[%s4 + $0x90] sm:$0xff]
      %v576 = vld [vmem:[%s4 + $0x98] sm:$0xff]
      %v577 = vld [vmem:[%s4 + $0xa0] sm:$0xff]
      %v578 = vld [vmem:[%s4 + $0xa8] sm:$0xff]
      %v579 = vld [vmem:[%s4 + $0xb0] sm:$0xff]
      %v580 = vld [vmem:[%s4 + $0xb8] sm:$0xff]
      %v581 = vld [vmem:[%s4 + $0xc0] sm:$0xff]
      %v582 = vld [vmem:[%s4 + $0xc8] sm:$0xff]
      %v583 = vld [vmem:[%s4 + $0xd0] sm:$0xff]
      %v584 = vld [vmem:[%s4 + $0xd8] sm:$0xff]
      %v585 = vld [vmem:[%s4 + $0xe0] sm:$0xff]
      %v586 = vld [vmem:[%s4 + $0xe8] sm:$0xff]
      %v587 = vld [vmem:[%s4 + $0xf0] sm:$0xff]
      %v588 = vld [vmem:[%s4 + $0xf8] sm:$0xff]
      %590 = vrot.lane.b32.xlu0 %v550, 17
      %v591 = vpop.permute.xlu0 %590
      %594 = vrot.lane.b32.xlu0 %v549, 17
      %v595 = vpop.permute.xlu0 %594
      %vm596 = vcmask 138240
      %v597 = vsel %vm596, %v595, %v591
      %v600 = vsel %vm596, %v591, %v595
      %v601 = vlaneseq
      %v602 = vshrl.u32 %v601, 7
      %v603 = vsub.s32 0, %v602
      %v604 = vrot.slane %v553, %v603
      %v605 = vlaneseq
      %v606 = vshrl.u32 %v605, 7
      %v607 = vsub.s32 0, %v606
      %v608 = vrot.slane %v554, %v607
      %v609 = vmul.f32 %v600, %v604
      %v610 = vmul.f32 %v597, %v608
      %611 = vrot.lane.b32.xlu0 %v550, 16
      %v612 = vpop.permute.xlu0 %611
      %614 = vrot.lane.b32.xlu0 %v549, 16
      %v615 = vpop.permute.xlu0 %614
      %vm616 = vcmask 130048
      %v617 = vsel %vm616, %v615, %v612
      %v620 = vsel %vm616, %v612, %v615
      %v621 = vlaneseq
      %v622 = vshrl.u32 %v621, 7
      %v623 = vsub.s32 1, %v622
      %v624 = vrot.slane %v553, %v623
      %v625 = vlaneseq
      %v626 = vshrl.u32 %v625, 7
      %v627 = vsub.s32 1, %v626
      %v628 = vrot.slane %v554, %v627
      %v629 = vmul.f32 %v620, %v624
      %v630 = vmul.f32 %v617, %v628
      %631 = vrot.lane.b32.xlu0 %v550, 15
      %v632 = vpop.permute.xlu0 %631
      %634 = vrot.lane.b32.xlu0 %v549, 15
      %v635 = vpop.permute.xlu0 %634
      %vm636 = vcmask 121856
      %v637 = vsel %vm636, %v635, %v632
      %v640 = vsel %vm636, %v632, %v635
      %v641 = vlaneseq
      %v642 = vshrl.u32 %v641, 7
      %v643 = vsub.s32 2, %v642
      %v644 = vrot.slane %v553, %v643
      %v645 = vlaneseq
      %v646 = vshrl.u32 %v645, 7
      %v647 = vsub.s32 2, %v646
      %v648 = vrot.slane %v554, %v647
      %v649 = vmul.f32 %v640, %v644
      %v650 = vmul.f32 %v637, %v648
      %651 = vrot.lane.b32.xlu0 %v550, 1
      %v652 = vpop.permute.xlu0 %651
      %654 = vrot.lane.b32.xlu0 %v549, 1
      %v655 = vpop.permute.xlu0 %654
      %vm656 = vcmask 7168
      %v657 = vsel %vm656, %v655, %v652
      %v660 = vsel %vm656, %v652, %v655
      %v661 = vlaneseq
      %v662 = vshrl.u32 %v661, 7
      %v663 = vsub.s32 3, %v662
      %v664 = vrot.slane %v553, %v663
      %v665 = vlaneseq
      %v666 = vshrl.u32 %v665, 7
      %v667 = vsub.s32 3, %v666
      %v668 = vrot.slane %v554, %v667
      %v669 = vmul.f32 %v660, %v664
      %v670 = vmul.f32 %v657, %v668
      %671 = vrot.lane.b32.xlu0 %v549, 127
      %v672 = vpop.permute.xlu0 %671
      %673 = vrot.lane.b32.xlu0 %v550, 127
      %v674 = vpop.permute.xlu0 %673
      %vm675 = vcmask 1039360
      %v676 = vsel %vm675, %v672, %v674
      %v680 = vsel %vm675, %v674, %v672
      %v681 = vlaneseq
      %v682 = vshrl.u32 %v681, 7
      %v683 = vsub.s32 5, %v682
      %v684 = vrot.slane %v553, %v683
      %v685 = vlaneseq
      %v686 = vshrl.u32 %v685, 7
      %v687 = vsub.s32 5, %v686
      %v688 = vrot.slane %v554, %v687
      %v689 = vmul.f32 %v676, %v684
      %v690 = vmul.f32 %v680, %v688
      %691 = vrot.lane.b32.xlu0 %v549, 113
      %v692 = vpop.permute.xlu0 %691
      %693 = vrot.lane.b32.xlu0 %v550, 113
      %v694 = vpop.permute.xlu0 %693
      %vm695 = vcmask 924672
      %v696 = vsel %vm695, %v692, %v694
      %v700 = vsel %vm695, %v694, %v692
      %v701 = vlaneseq
      %v702 = vshrl.u32 %v701, 7
      %v703 = vsub.s32 6, %v702
      %v704 = vrot.slane %v553, %v703
      %v705 = vlaneseq
      %v706 = vshrl.u32 %v705, 7
      %v707 = vsub.s32 6, %v706
      %v708 = vrot.slane %v554, %v707
      %v709 = vmul.f32 %v696, %v704
      %v710 = vmul.f32 %v700, %v708
      %711 = vrot.lane.b32.xlu0 %v549, 112
      %v712 = vpop.permute.xlu0 %711
      %713 = vrot.lane.b32.xlu0 %v550, 112
      %v714 = vpop.permute.xlu0 %713
      %vm715 = vcmask 916480
      %v716 = vsel %vm715, %v712, %v714
      %v720 = vsel %vm715, %v714, %v712
      %v721 = vlaneseq
      %v722 = vshrl.u32 %v721, 7
      %v723 = vsub.s32 7, %v722
      %v724 = vrot.slane %v553, %v723
      %v725 = vlaneseq
      %v726 = vshrl.u32 %v725, 7
      %v727 = vsub.s32 7, %v726
      %v728 = vrot.slane %v554, %v727
      %v729 = vmul.f32 %v716, %v724
      %v730 = vmul.f32 %v720, %v728
      %731 = vrot.lane.b32.xlu0 %v549, 111
      %v732 = vpop.permute.xlu0 %731
      %733 = vrot.lane.b32.xlu0 %v550, 111
      %v734 = vpop.permute.xlu0 %733
      %vm735 = vcmask 908288
      %v736 = vsel %vm735, %v732, %v734
      %v740 = vsel %vm735, %v734, %v732
      %v741 = vlaneseq
      %v742 = vshrl.u32 %v741, 7
      %v743 = vsub.s32 0, %v742
      %v744 = vrot.slane %v555, %v743
      %v745 = vlaneseq
      %v746 = vshrl.u32 %v745, 7
      %v747 = vsub.s32 0, %v746
      %v748 = vrot.slane %v556, %v747
      %v749 = vmul.f32 %v736, %v744
      %v750 = vmul.f32 %v740, %v748
      %752 = vset.pattern.permute.xlu0 0
      %753 = vperm.xlu0 %752, %v552
      %v754 = vpop.permute.xlu0 %753
      %vm756 = vcmask 588800
      %v758 = vsel %vm756, %v551, 0
      %760 = vmatprep.subr.mxu0 %v610
      %761 = vmatpush1.msra.mxu0 %v609
      %762 = vmatprep.subr.mxu0 %v630
      %763 = vmatpush1.msra.mxu0 %v629
      %764 = vmatprep.subr.mxu0 %v650
      %765 = vmatpush1.msra.mxu0 %v649
      %766 = vmatprep.subr.mxu0 %v670
      %767 = vmatpush1.msra.mxu0 %v669
      %768 = vmatprep.subr.mxu0 %v550
      %769 = vmatpush1.msra.mxu0 %v549
      %770 = vmatprep.subr.mxu0 %v690
      %771 = vmatpush1.msra.mxu0 %v689
      %772 = vmatprep.subr.mxu0 %v710
      %773 = vmatpush1.msra.mxu0 %v709
      %774 = vmatprep.subr.mxu0 %v730
      %775 = vmatpush1.msra.mxu0 %v729
      %776 = vmatprep.subr.mxu0 %v750
      %777 = vmatpush1.msra.mxu0 %v749
      %778 = vmatprep.subr.mxu0 0.0
      %779 = vmatpush1.msra.mxu0 0.0
      %780 = vmatprep.subr.mxu0 0.0
      %781 = vmatpush1.msra.mxu0 0.0
      %782 = vmatprep.subr.mxu0 0.0
      %783 = vmatpush1.msra.mxu0 0.0
      %784 = vmatprep.subr.mxu0 0.0
      %785 = vmatpush1.msra.mxu0 0.0
      %786 = vmatprep.subr.mxu0 0.0
      %787 = vmatpush1.msra.mxu0 0.0
      %788 = vmatprep.subr.mxu0 0.0
      %789 = vmatpush1.msra.mxu0 0.0
      %790 = vmatprep.subr.mxu0 0.0
      %791 = vmatpush1.msra.mxu0 0.0
      %792 = vmatprep.subr.mxu0 0.0
      %793 = vmatpush1.msra.mxu0 0.0
      %794 = vmatprep.subr.mxu0 0.0
      %795 = vmatpush1.msra.mxu0 0.0
      %796 = vmatprep.subr.mxu0 0.0
      %797 = vmatpush1.msra.mxu0 0.0
      %798 = vmatprep.subr.mxu0 0.0
      %799 = vmatpush1.msra.mxu0 0.0
      %800 = vmatprep.subr.mxu0 0.0
      %801 = vmatpush1.msra.mxu0 0.0
      %802 = vmatprep.subr.mxu0 0.0
      %803 = vmatpush1.msra.mxu0 0.0
      %804 = vmatprep.subr.mxu0 0.0
      %805 = vmatpush1.msra.mxu0 0.0
      %806 = vmatprep.subr.mxu0 0.0
      %807 = vmatpush1.msra.mxu0 0.0
      %808 = vmatprep.subr.mxu0 0.0
      %809 = vmatpush1.msra.mxu0 0.0
      %810 = vmatprep.subr.mxu0 0.0
      %811 = vmatpush1.msra.mxu0 0.0
      %812 = vmatprep.subr.mxu0 0.0
      %813 = vmatpush1.msra.mxu0 0.0
      %814 = vmatprep.subr.mxu0 0.0
      %815 = vmatpush1.msra.mxu0 0.0
      %816 = vmatprep.subr.mxu0 0.0
      %817 = vmatpush1.msra.mxu0 0.0
      %818 = vmatprep.subr.mxu0 0.0
      %819 = vmatpush1.msra.mxu0 0.0
      %820 = vmatprep.subr.mxu0 0.0
      %821 = vmatpush1.msra.mxu0 0.0
      %822 = vmatprep.subr.mxu0 0.0
      %823 = vmatpush1.msra.mxu0 0.0
      %824 = vmatprep.mubr.f32.mxu0 0.0
      %825 = vmatmul.mubr.f32.gmra.mrb[0].mxu0 %v758
      %v826 = vpop.f32.mrb[0].mxu0
      %v827 = vadd.f32 %v754, %v826
      %v828 = vpop.f32.mrb[0].mxu0
      %v829 = vadd.f32 %v754, %v828
      %830 = vdwg.mxu0
      %v831 = vmax.f32 %v827, 0.0
      %v832 = vmax.f32 %v829, 0.0
      %835 = vrot.lane.b32.xlu0 %v831, 127
      %v836 = vpop.permute.xlu0 %835
      %837 = vrot.lane.b32.xlu0 %v832, 127
      %v838 = vpop.permute.xlu0 %837
      %v839 = vsel %vm675, %v836, %v838
      %v843 = vsel %vm675, %v838, %v836
      %v844 = vmax.f32 %v831, %v839
      %v845 = vmax.f32 %v832, %v843
      %848 = vrot.lane.b32.xlu0 %v844, 112
      %v849 = vpop.permute.xlu0 %848
      %850 = vrot.lane.b32.xlu0 %v845, 112
      %v851 = vpop.permute.xlu0 %850
      %v852 = vsel %vm715, %v849, %v851
      %v856 = vsel %vm715, %v851, %v849
      %v857 = vmax.f32 %v844, %v852
      %v858 = vmax.f32 %v845, %v856
      %859 = vmatprep.subr.mxu0 0.0
      %860 = vmatpush1.msra.mxu0 %v557
      %861 = vmatprep.subr.mxu0 0.0
      %862 = vmatpush1.msra.mxu0 %v558
      %863 = vmatprep.subr.mxu0 0.0
      %864 = vmatpush1.msra.mxu0 %v559
      %865 = vmatprep.subr.mxu0 0.0
      %866 = vmatpush1.msra.mxu0 %v560
      %867 = vmatprep.subr.mxu0 0.0
      %868 = vmatpush1.msra.mxu0 %v561
      %869 = vmatprep.subr.mxu0 0.0
      %870 = vmatpush1.msra.mxu0 %v562
      %871 = vmatprep.subr.mxu0 0.0
      %872 = vmatpush1.msra.mxu0 %v563
      %873 = vmatprep.subr.mxu0 0.0
      %874 = vmatpush1.msra.mxu0 %v564
      %875 = vmatprep.subr.mxu0 0.0
      %876 = vmatpush1.msra.mxu0 %v565
      %877 = vmatprep.subr.mxu0 0.0
      %878 = vmatpush1.msra.mxu0 %v566
      %879 = vmatprep.subr.mxu0 0.0
      %880 = vmatpush1.msra.mxu0 %v567
      %881 = vmatprep.subr.mxu0 0.0
      %882 = vmatpush1.msra.mxu0 %v568
      %883 = vmatprep.subr.mxu0 0.0
      %884 = vmatpush1.msra.mxu0 %v569
      %885 = vmatprep.subr.mxu0 0.0
      %886 = vmatpush1.msra.mxu0 %v570
      %887 = vmatprep.subr.mxu0 0.0
      %888 = vmatpush1.msra.mxu0 %v571
      %889 = vmatprep.subr.mxu0 0.0
      %890 = vmatpush1.msra.mxu0 %v572
      %891 = vmatprep.subr.mxu0 0.0
      %892 = vmatpush1.msra.mxu0 %v573
      %893 = vmatprep.subr.mxu0 0.0
      %894 = vmatpush1.msra.mxu0 %v574
      %895 = vmatprep.subr.mxu0 0.0
      %896 = vmatpush1.msra.mxu0 %v575
      %897 = vmatprep.subr.mxu0 0.0
      %898 = vmatpush1.msra.mxu0 %v576
      %899 = vmatprep.subr.mxu0 0.0
      %900 = vmatpush1.msra.mxu0 %v577
      %901 = vmatprep.subr.mxu0 0.0
      %902 = vmatpush1.msra.mxu0 %v578
      %903 = vmatprep.subr.mxu0 0.0
      %904 = vmatpush1.msra.mxu0 %v579
      %905 = vmatprep.subr.mxu0 0.0
      %906 = vmatpush1.msra.mxu0 %v580
      %907 = vmatprep.subr.mxu0 0.0
      %908 = vmatpush1.msra.mxu0 %v581
      %909 = vmatprep.subr.mxu0 0.0
      %910 = vmatpush1.msra.mxu0 %v582
      %911 = vmatprep.subr.mxu0 0.0
      %912 = vmatpush1.msra.mxu0 %v583
      %913 = vmatprep.subr.mxu0 0.0
      %914 = vmatpush1.msra.mxu0 %v584
      %915 = vmatprep.subr.mxu0 0.0
      %916 = vmatpush1.msra.mxu0 %v585
      %917 = vmatprep.subr.mxu0 0.0
      %918 = vmatpush1.msra.mxu0 %v586
      %919 = vmatprep.subr.mxu0 0.0
      %920 = vmatpush1.msra.mxu0 %v587
      %921 = vmatprep.subr.mxu0 0.0
      %922 = vmatpush1.msra.mxu0 %v588
      %923 = vmatprep.mubr.f32.mxu0 %v858
      %924 = vmatmul.mubr.f32.gmra.mrb[0].mxu0 %v857
      %v925 = vpop.f32.mrb[0].mxu0
      %v926 = vadd.f32 0.0, %v925
      %v927 = vpop.f32.mrb[0].mxu0
      %928 = vdwg.mxu0
      %v929 = vld [vmem:[%s5] sm:$0xff]
      %v930 = vld [vmem:[%s5 + $0x8] sm:$0xff]
      %v931 = vld [vmem:[%s6] sm:$0xff]
      %v932 = vld [vmem:[%s6 + $0x8] sm:$0xff]
      %v933 = vld [vmem:[%s7] sm:$0xff]
      %v934 = vld [vmem:[%s7 + $0x8] sm:$0x1]
      %v935 = vld [vmem:[%s8] sm:$0xff]
      %v936 = vld [vmem:[%s8 + $0x8] sm:$0xff]
      %v937 = vld [vmem:[%s8 + $0x10] sm:$0xff]
      %v938 = vld [vmem:[%s8 + $0x18] sm:$0xff]
      %v939 = vld [vmem:[%s8 + $0x20] sm:$0xff]
      %v940 = vld [vmem:[%s8 + $0x28] sm:$0xff]
      %v941 = vld [vmem:[%s8 + $0x30] sm:$0xff]
      %v942 = vld [vmem:[%s8 + $0x38] sm:$0xff]
      %944 = vrot.lane.b32.xlu0 %v926, 73
      %v945 = vpop.permute.xlu0 %944
      %947 = vrot.lane.b32.xlu0 %v926, 9
      %v948 = vpop.permute.xlu0 %947
      %vm950 = vcmask 72704
      %v951 = vsel %vm950, %v945, %v948
      %v952 = vlaneseq
      %v953 = vshrl.u32 %v952, 7
      %v954 = vsub.s32 0, %v953
      %v955 = vrot.slane %v933, %v954
      %v956 = vmul.f32 %v951, %v955
      %957 = vrot.lane.b32.xlu0 %v926, 72
      %v958 = vpop.permute.xlu0 %957
      %960 = vrot.lane.b32.xlu0 %v926, 8
      %v961 = vpop.permute.xlu0 %960
      %vm963 = vcmask 64512
      %v964 = vsel %vm963, %v958, %v961
      %v965 = vlaneseq
      %v966 = vshrl.u32 %v965, 7
      %v967 = vsub.s32 1, %v966
      %v968 = vrot.slane %v933, %v967
      %v969 = vmul.f32 %v964, %v968
      %970 = vrot.lane.b32.xlu0 %v926, 71
      %v971 = vpop.permute.xlu0 %970
      %973 = vrot.lane.b32.xlu0 %v926, 7
      %v974 = vpop.permute.xlu0 %973
      %vm976 = vcmask 56320
      %v977 = vsel %vm976, %v971, %v974
      %v978 = vlaneseq
      %v979 = vshrl.u32 %v978, 7
      %v980 = vsub.s32 2, %v979
      %v981 = vrot.slane %v933, %v980
      %v982 = vmul.f32 %v977, %v981
      %983 = vrot.lane.b32.xlu0 %v926, 65
      %v984 = vpop.permute.xlu0 %983
      %986 = vrot.lane.b32.xlu0 %v926, 1
      %v987 = vpop.permute.xlu0 %986
      %v989 = vsel %vm656, %v984, %v987
      %v990 = vlaneseq
      %v991 = vshrl.u32 %v990, 7
      %v992 = vsub.s32 3, %v991
      %v993 = vrot.slane %v933, %v992
      %v994 = vmul.f32 %v989, %v993
      %995 = vrot.lane.b32.xlu0 %v926, 127
      %v996 = vpop.permute.xlu0 %995
      %998 = vrot.lane.b32.xlu0 %v926, 63
      %v999 = vpop.permute.xlu0 %998
      %vm1001 = vcmask 515072
      %v1002 = vsel %vm1001, %v996, %v999
      %v1003 = vlaneseq
      %v1004 = vshrl.u32 %v1003, 7
      %v1005 = vsub.s32 5, %v1004
      %v1006 = vrot.slane %v933, %v1005
      %v1007 = vmul.f32 %v1002, %v1006
      %1008 = vrot.lane.b32.xlu0 %v926, 121
      %v1009 = vpop.permute.xlu0 %1008
      %1011 = vrot.lane.b32.xlu0 %v926, 57
      %v1012 = vpop.permute.xlu0 %1011
      %vm1014 = vcmask 465920
      %v1015 = vsel %vm1014, %v1009, %v1012
      %v1016 = vlaneseq
      %v1017 = vshrl.u32 %v1016, 7
      %v1018 = vsub.s32 6, %v1017
      %v1019 = vrot.slane %v933, %v1018
      %v1020 = vmul.f32 %v1015, %v1019
      %1021 = vrot.lane.b32.xlu0 %v926, 120
      %v1022 = vpop.permute.xlu0 %1021
      %1024 = vrot.lane.b32.xlu0 %v926, 56
      %v1025 = vpop.permute.xlu0 %1024
      %vm1027 = vcmask 457728
      %v1028 = vsel %vm1027, %v1022, %v1025
      %v1029 = vlaneseq
      %v1030 = vshrl.u32 %v1029, 7
      %v1031 = vsub.s32 7, %v1030
      %v1032 = vrot.slane %v933, %v1031
      %v1033 = vmul.f32 %v1028, %v1032
      %1034 = vrot.lane.b32.xlu0 %v926, 119
      %v1035 = vpop.permute.xlu0 %1034
      %1037 = vrot.lane.b32.xlu0 %v926, 55
      %v1038 = vpop.permute.xlu0 %1037
      %vm1040 = vcmask 449536
      %v1041 = vsel %vm1040, %v1035, %v1038
      %v1042 = vlaneseq
      %v1043 = vshrl.u32 %v1042, 7
      %v1044 = vsub.s32 0, %v1043
      %v1045 = vrot.slane %v934, %v1044
      %v1046 = vmul.f32 %v1041, %v1045
      %1048 = vset.pattern.permute.xlu0 0
      %1049 = vperm.xlu0 %1048, %v931
      %v1050 = vpop.permute.xlu0 %1049
      %1053 = vset.pattern.permute.xlu0 0
      %1054 = vperm.xlu0 %1053, %v932
      %v1055 = vpop.permute.xlu0 %1054
      %v1058 = vsel %vm756, %v929, 0
      %v1061 = vsel %vm756, %v930, 0
      %1063 = vmatprep.subr.mxu0 0.0
      %1064 = vmatpush1.msra.mxu0 %v956
      %1065 = vmatprep.subr.mxu0 0.0
      %1066 = vmatpush1.msra.mxu0 %v969
      %1067 = vmatprep.subr.mxu0 0.0
      %1068 = vmatpush1.msra.mxu0 %v982
      %1069 = vmatprep.subr.mxu0 0.0
      %1070 = vmatpush1.msra.mxu0 %v994
      %1071 = vmatprep.subr.mxu0 0.0
      %1072 = vmatpush1.msra.mxu0 %v926
      %1073 = vmatprep.subr.mxu0 0.0
      %1074 = vmatpush1.msra.mxu0 %v1007
      %1075 = vmatprep.subr.mxu0 0.0
      %1076 = vmatpush1.msra.mxu0 %v1020
      %1077 = vmatprep.subr.mxu0 0.0
      %1078 = vmatpush1.msra.mxu0 %v1033
      %1079 = vmatprep.subr.mxu0 0.0
      %1080 = vmatpush1.msra.mxu0 %v1046
      %1081 = vmatprep.subr.mxu0 0.0
      %1082 = vmatpush1.msra.mxu0 0.0
      %1083 = vmatprep.subr.mxu0 0.0
      %1084 = vmatpush1.msra.mxu0 0.0
      %1085 = vmatprep.subr.mxu0 0.0
      %1086 = vmatpush1.msra.mxu0 0.0
      %1087 = vmatprep.subr.mxu0 0.0
      %1088 = vmatpush1.msra.mxu0 0.0
      %1089 = vmatprep.subr.mxu0 0.0
      %1090 = vmatpush1.msra.mxu0 0.0
      %1091 = vmatprep.subr.mxu0 0.0
      %1092 = vmatpush1.msra.mxu0 0.0
      %1093 = vmatprep.subr.mxu0 0.0
      %1094 = vmatpush1.msra.mxu0 0.0
      %1095 = vmatprep.subr.mxu0 0.0
      %1096 = vmatpush1.msra.mxu0 0.0
      %1097 = vmatprep.subr.mxu0 0.0
      %1098 = vmatpush1.msra.mxu0 0.0
      %1099 = vmatprep.subr.mxu0 0.0
      %1100 = vmatpush1.msra.mxu0 0.0
      %1101 = vmatprep.subr.mxu0 0.0
      %1102 = vmatpush1.msra.mxu0 0.0
      %1103 = vmatprep.subr.mxu0 0.0
      %1104 = vmatpush1.msra.mxu0 0.0
      %1105 = vmatprep.subr.mxu0 0.0
      %1106 = vmatpush1.msra.mxu0 0.0
      %1107 = vmatprep.subr.mxu0 0.0
      %1108 = vmatpush1.msra.mxu0 0.0
      %1109 = vmatprep.subr.mxu0 0.0
      %1110 = vmatpush1.msra.mxu0 0.0
      %1111 = vmatprep.subr.mxu0 0.0
      %1112 = vmatpush1.msra.mxu0 0.0
      %1113 = vmatprep.subr.mxu0 0.0
      %1114 = vmatpush1.msra.mxu0 0.0
      %1115 = vmatprep.subr.mxu0 0.0
      %1116 = vmatpush1.msra.mxu0 0.0
      %1117 = vmatprep.subr.mxu0 0.0
      %1118 = vmatpush1.msra.mxu0 0.0
      %1119 = vmatprep.subr.mxu0 0.0
      %1120 = vmatpush1.msra.mxu0 0.0
      %1121 = vmatprep.subr.mxu0 0.0
      %1122 = vmatpush1.msra.mxu0 0.0
      %1123 = vmatprep.subr.mxu0 0.0
      %1124 = vmatpush1.msra.mxu0 0.0
      %1125 = vmatprep.subr.mxu0 0.0
      %1126 = vmatpush1.msra.mxu0 0.0
      %1127 = vmatprep.mubr.f32.mxu0 0.0
      %1128 = vmatmul.mubr.f32.gmra.mrb[0].mxu0 %v1058
      %v1129 = vpop.f32.mrb[0].mxu0
      %v1130 = vadd.f32 %v1050, %v1129
      %v1131 = vpop.f32.mrb[0].mxu0
      %1132 = vmatprep.mubr.f32.mxu0 0.0
      %1133 = vmatmul.mubr.f32.gmra.mrb[0].mxu0 %v1061
      %v1134 = vpop.f32.mrb[0].mxu0
      %v1135 = vadd.f32 %v1055, %v1134
      %v1136 = vpop.f32.mrb[0].mxu0
      %1137 = vdwg.mxu0
      %v1138 = vmax.f32 %v1130, 0.0
      %v1139 = vmax.f32 %v1135, 0.0
      %1142 = vrot.lane.b32.xlu0 %v1138, 127
      %v1143 = vpop.permute.xlu0 %1142
      %1144 = vrot.lane.b32.xlu0 %v1139, 127
      %v1145 = vpop.permute.xlu0 %1144
      %1148 = vrot.lane.b32.xlu0 %v1138, 63
      %v1149 = vpop.permute.xlu0 %1148
      %1150 = vrot.lane.b32.xlu0 %v1139, 63
      %v1151 = vpop.permute.xlu0 %1150
      %v1154 = vsel %vm1001, %v1143, %v1149
      %v1155 = vsel %vm1001, %v1145, %v1151
      %v1156 = vmax.f32 %v1138, %v1154
      %v1157 = vmax.f32 %v1139, %v1155
      %1160 = vrot.lane.b32.xlu0 %v1156, 120
      %v1161 = vpop.permute.xlu0 %1160
      %1162 = vrot.lane.b32.xlu0 %v1157, 120
      %v1163 = vpop.permute.xlu0 %1162
      %1166 = vrot.lane.b32.xlu0 %v1156, 56
      %v1167 = vpop.permute.xlu0 %1166
      %1168 = vrot.lane.b32.xlu0 %v1157, 56
      %v1169 = vpop.permute.xlu0 %1168
      %v1172 = vsel %vm1027, %v1161, %v1167
      %v1173 = vsel %vm1027, %v1163, %v1169
      %v1174 = vmax.f32 %v1156, %v1172
      %v1175 = vmax.f32 %v1157, %v1173
      %vm1176 = vcmask 523264
      %v1178 = vsel %vm1176, %v1174, 0
      %v1181 = vsel %vm1176, %v1175, 0
      %1183 = vmatprep.subr.mxu0 0.0
      %1184 = vmatpush1.msra.mxu0 %v935
      %1185 = vmatprep.subr.mxu0 0.0
      %1186 = vmatpush1.msra.mxu0 %v936
      %1187 = vmatprep.subr.mxu0 0.0
      %1188 = vmatpush1.msra.mxu0 %v937
      %1189 = vmatprep.subr.mxu0 0.0
      %1190 = vmatpush1.msra.mxu0 %v938
      %1191 = vmatprep.subr.mxu0 0.0
      %1192 = vmatpush1.msra.mxu0 %v939
      %1193 = vmatprep.subr.mxu0 0.0
      %1194 = vmatpush1.msra.mxu0 %v940
      %1195 = vmatprep.subr.mxu0 0.0
      %1196 = vmatpush1.msra.mxu0 %v941
      %1197 = vmatprep.subr.mxu0 0.0
      %1198 = vmatpush1.msra.mxu0 %v942
      %1199 = vmatprep.subr.mxu0 0.0
      %1200 = vmatpush1.msra.mxu0 0.0
      %1201 = vmatprep.subr.mxu0 0.0
      %1202 = vmatpush1.msra.mxu0 0.0
      %1203 = vmatprep.subr.mxu0 0.0
      %1204 = vmatpush1.msra.mxu0 0.0
      %1205 = vmatprep.subr.mxu0 0.0
      %1206 = vmatpush1.msra.mxu0 0.0
      %1207 = vmatprep.subr.mxu0 0.0
      %1208 = vmatpush1.msra.mxu0 0.0
      %1209 = vmatprep.subr.mxu0 0.0
      %1210 = vmatpush1.msra.mxu0 0.0
      %1211 = vmatprep.subr.mxu0 0.0
      %1212 = vmatpush1.msra.mxu0 0.0
      %1213 = vmatprep.subr.mxu0 0.0
      %1214 = vmatpush1.msra.mxu0 0.0
      %1215 = vmatprep.subr.mxu0 0.0
      %1216 = vmatpush1.msra.mxu0 0.0
      %1217 = vmatprep.subr.mxu0 0.0
      %1218 = vmatpush1.msra.mxu0 0.0
      %1219 = vmatprep.subr.mxu0 0.0
      %1220 = vmatpush1.msra.mxu0 0.0
      %1221 = vmatprep.subr.mxu0 0.0
      %1222 = vmatpush1.msra.mxu0 0.0
      %1223 = vmatprep.subr.mxu0 0.0
      %1224 = vmatpush1.msra.mxu0 0.0
      %1225 = vmatprep.subr.mxu0 0.0
      %1226 = vmatpush1.msra.mxu0 0.0
      %1227 = vmatprep.subr.mxu0 0.0
      %1228 = vmatpush1.msra.mxu0 0.0
      %1229 = vmatprep.subr.mxu0 0.0
      %1230 = vmatpush1.msra.mxu0 0.0
      %1231 = vmatprep.subr.mxu0 0.0
      %1232 = vmatpush1.msra.mxu0 0.0
      %1233 = vmatprep.subr.mxu0 0.0
      %1234 = vmatpush1.msra.mxu0 0.0
      %1235 = vmatprep.subr.mxu0 0.0
      %1236 = vmatpush1.msra.mxu0 0.0
      %1237 = vmatprep.subr.mxu0 0.0
      %1238 = vmatpush1.msra.mxu0 0.0
      %1239 = vmatprep.subr.mxu0 0.0
      %1240 = vmatpush1.msra.mxu0 0.0
      %1241 = vmatprep.subr.mxu0 0.0
      %1242 = vmatpush1.msra.mxu0 0.0
      %1243 = vmatprep.subr.mxu0 0.0
      %1244 = vmatpush1.msra.mxu0 0.0
      %1245 = vmatprep.subr.mxu0 0.0
      %1246 = vmatpush1.msra.mxu0 0.0
      %1247 = vmatprep.mubr.f32.mxu0 0.0
      %1248 = vmatmul.mubr.f32.gmra.mrb[0].mxu0 %v1178
      %v1249 = vpop.f32.mrb[0].mxu0
      %v1250 = vadd.f32 0.0, %v1249
      %v1251 = vpop.f32.mrb[0].mxu0
      %1252 = vmatprep.mubr.f32.mxu0 0.0
      %1253 = vmatmul.mubr.f32.gmra.mrb[0].mxu0 %v1181
      %v1254 = vpop.f32.mrb[0].mxu0
      %v1255 = vadd.f32 0.0, %v1254
      %v1256 = vpop.f32.mrb[0].mxu0
      %1257 = vdwg.mxu0
      %v1258 = vld [vmem:[%s9] sm:$0xff]
      %v1259 = vld [vmem:[%s9 + $0x8] sm:$0xff]
      %v1260 = vld [vmem:[%s10] sm:$0xff]
      %v1261 = vld [vmem:[%s10 + $0x8] sm:$0xff]
      %v1262 = vld [vmem:[%s11] sm:$0xff]
      %v1263 = vld [vmem:[%s12] sm:$0xff]
      %v1264 = vld [vmem:[%s12 + $0x8] sm:$0x1]
      %v1266 = vsel %vm616, %v1250, 0
      %v1269 = vsel %vm616, %v1255, 0
      %1271 = vmatprep.subr.mxu0 0.0
      %1272 = vmatpush1.msra.mxu0 %v1258
      %1273 = vmatprep.subr.mxu0 0.0
      %1274 = vmatpush1.msra.mxu0 %v1259
      %1275 = vmatprep.subr.mxu0 0.0
      %1276 = vmatpush1.msra.mxu0 0.0
      %1277 = vmatprep.subr.mxu0 0.0
      %1278 = vmatpush1.msra.mxu0 0.0
      %1279 = vmatprep.subr.mxu0 0.0
      %1280 = vmatpush1.msra.mxu0 0.0
      %1281 = vmatprep.subr.mxu0 0.0
      %1282 = vmatpush1.msra.mxu0 0.0
      %1283 = vmatprep.subr.mxu0 0.0
      %1284 = vmatpush1.msra.mxu0 0.0
      %1285 = vmatprep.subr.mxu0 0.0
      %1286 = vmatpush1.msra.mxu0 0.0
      %1287 = vmatprep.subr.mxu0 0.0
      %1288 = vmatpush1.msra.mxu0 0.0
      %1289 = vmatprep.subr.mxu0 0.0
      %1290 = vmatpush1.msra.mxu0 0.0
      %1291 = vmatprep.subr.mxu0 0.0
      %1292 = vmatpush1.msra.mxu0 0.0
      %1293 = vmatprep.subr.mxu0 0.0
      %1294 = vmatpush1.msra.mxu0 0.0
      %1295 = vmatprep.subr.mxu0 0.0
      %1296 = vmatpush1.msra.mxu0 0.0
      %1297 = vmatprep.subr.mxu0 0.0
      %1298 = vmatpush1.msra.mxu0 0.0
      %1299 = vmatprep.subr.mxu0 0.0
      %1300 = vmatpush1.msra.mxu0 0.0
      %1301 = vmatprep.subr.mxu0 0.0
      %1302 = vmatpush1.msra.mxu0 0.0
      %1303 = vmatprep.subr.mxu0 0.0
      %1304 = vmatpush1.msra.mxu0 0.0
      %1305 = vmatprep.subr.mxu0 0.0
      %1306 = vmatpush1.msra.mxu0 0.0
      %1307 = vmatprep.subr.mxu0 0.0
      %1308 = vmatpush1.msra.mxu0 0.0
      %1309 = vmatprep.subr.mxu0 0.0
      %1310 = vmatpush1.msra.mxu0 0.0
      %1311 = vmatprep.subr.mxu0 0.0
      %1312 = vmatpush1.msra.mxu0 0.0
      %1313 = vmatprep.subr.mxu0 0.0
      %1314 = vmatpush1.msra.mxu0 0.0
      %1315 = vmatprep.subr.mxu0 0.0
      %1316 = vmatpush1.msra.mxu0 0.0
      %1317 = vmatprep.subr.mxu0 0.0
      %1318 = vmatpush1.msra.mxu0 0.0
      %1319 = vmatprep.subr.mxu0 0.0
      %1320 = vmatpush1.msra.mxu0 0.0
      %1321 = vmatprep.subr.mxu0 0.0
      %1322 = vmatpush1.msra.mxu0 0.0
      %1323 = vmatprep.subr.mxu0 0.0
      %1324 = vmatpush1.msra.mxu0 0.0
      %1325 = vmatprep.subr.mxu0 0.0
      %1326 = vmatpush1.msra.mxu0 0.0
      %1327 = vmatprep.subr.mxu0 0.0
      %1328 = vmatpush1.msra.mxu0 0.0
      %1329 = vmatprep.subr.mxu0 0.0
      %1330 = vmatpush1.msra.mxu0 0.0
      %1331 = vmatprep.subr.mxu0 0.0
      %1332 = vmatpush1.msra.mxu0 0.0
      %1333 = vmatprep.subr.mxu0 0.0
      %1334 = vmatpush1.msra.mxu0 0.0
      %1335 = vmatprep.mubr.f32.mxu0 0.0
      %1336 = vmatmul.mubr.f32.gmra.mrb[0].mxu0 %v1266
      %v1337 = vpop.f32.mrb[0].mxu0
      %v1338 = vadd.f32 0.0, %v1337
      %v1339 = vpop.f32.mrb[0].mxu0
      %1340 = vmatprep.mubr.f32.mxu0 0.0
      %1341 = vmatmul.mubr.f32.gmra.mrb[0].mxu0 %v1269
      %v1342 = vpop.f32.mrb[0].mxu0
      %v1343 = vadd.f32 0.0, %v1342
      %v1344 = vpop.f32.mrb[0].mxu0
      %1345 = vdwg.mxu0
      %1348 = vrot.lane.b32.xlu0 %v1338, 73
      %v1349 = vpop.permute.xlu0 %1348
      %1350 = vrot.lane.b32.xlu0 %v1343, 73
      %v1351 = vpop.permute.xlu0 %1350
      %1354 = vrot.lane.b32.xlu0 %v1338, 9
      %v1355 = vpop.permute.xlu0 %1354
      %1356 = vrot.lane.b32.xlu0 %v1343, 9
      %v1357 = vpop.permute.xlu0 %1356
      %v1360 = vsel %vm950, %v1349, %v1355
      %v1361 = vsel %vm950, %v1351, %v1357
      %v1362 = vlaneseq
      %v1363 = vshrl.u32 %v1362, 7
      %v1364 = vsub.s32 0, %v1363
      %v1365 = vrot.slane %v1263, %v1364
      %v1366 = vmul.f32 %v1360, %v1365
      %v1367 = vmul.f32 %v1361, %v1365
      %1368 = vrot.lane.b32.xlu0 %v1338, 72
      %v1369 = vpop.permute.xlu0 %1368
      %1370 = vrot.lane.b32.xlu0 %v1343, 72
      %v1371 = vpop.permute.xlu0 %1370
      %1374 = vrot.lane.b32.xlu0 %v1338, 8
      %v1375 = vpop.permute.xlu0 %1374
      %1376 = vrot.lane.b32.xlu0 %v1343, 8
      %v1377 = vpop.permute.xlu0 %1376
      %v1380 = vsel %vm963, %v1369, %v1375
      %v1381 = vsel %vm963, %v1371, %v1377
      %v1382 = vlaneseq
      %v1383 = vshrl.u32 %v1382, 7
      %v1384 = vsub.s32 1, %v1383
      %v1385 = vrot.slane %v1263, %v1384
      %v1386 = vmul.f32 %v1380, %v1385
      %v1387 = vmul.f32 %v1381, %v1385
      %1388 = vrot.lane.b32.xlu0 %v1338, 71
      %v1389 = vpop.permute.xlu0 %1388
      %1390 = vrot.lane.b32.xlu0 %v1343, 71
      %v1391 = vpop.permute.xlu0 %1390
      %1394 = vrot.lane.b32.xlu0 %v1338, 7
      %v1395 = vpop.permute.xlu0 %1394
      %1396 = vrot.lane.b32.xlu0 %v1343, 7
      %v1397 = vpop.permute.xlu0 %1396
      %v1400 = vsel %vm976, %v1389, %v1395
      %v1401 = vsel %vm976, %v1391, %v1397
      %v1402 = vlaneseq
      %v1403 = vshrl.u32 %v1402, 7
      %v1404 = vsub.s32 2, %v1403
      %v1405 = vrot.slane %v1263, %v1404
      %v1406 = vmul.f32 %v1400, %v1405
      %v1407 = vmul.f32 %v1401, %v1405
      %1408 = vrot.lane.b32.xlu0 %v1338, 65
      %v1409 = vpop.permute.xlu0 %1408
      %1410 = vrot.lane.b32.xlu0 %v1343, 65
      %v1411 = vpop.permute.xlu0 %1410
      %1414 = vrot.lane.b32.xlu0 %v1338, 1
      %v1415 = vpop.permute.xlu0 %1414
      %1416 = vrot.lane.b32.xlu0 %v1343, 1
      %v1417 = vpop.permute.xlu0 %1416
      %v1420 = vsel %vm656, %v1409, %v1415
      %v1421 = vsel %vm656, %v1411, %v1417
      %v1422 = vlaneseq
      %v1423 = vshrl.u32 %v1422, 7
      %v1424 = vsub.s32 3, %v1423
      %v1425 = vrot.slane %v1263, %v1424
      %v1426 = vmul.f32 %v1420, %v1425
      %v1427 = vmul.f32 %v1421, %v1425
      %1428 = vrot.lane.b32.xlu0 %v1338, 127
      %v1429 = vpop.permute.xlu0 %1428
      %1430 = vrot.lane.b32.xlu0 %v1343, 127
      %v1431 = vpop.permute.xlu0 %1430
      %1434 = vrot.lane.b32.xlu0 %v1338, 63
      %v1435 = vpop.permute.xlu0 %1434
      %1436 = vrot.lane.b32.xlu0 %v1343, 63
      %v1437 = vpop.permute.xlu0 %1436
      %v1440 = vsel %vm1001, %v1429, %v1435
      %v1441 = vsel %vm1001, %v1431, %v1437
      %v1442 = vlaneseq
      %v1443 = vshrl.u32 %v1442, 7
      %v1444 = vsub.s32 5, %v1443
      %v1445 = vrot.slane %v1263, %v1444
      %v1446 = vmul.f32 %v1440, %v1445
      %v1447 = vmul.f32 %v1441, %v1445
      %1448 = vrot.lane.b32.xlu0 %v1338, 121
      %v1449 = vpop.permute.xlu0 %1448
      %1450 = vrot.lane.b32.xlu0 %v1343, 121
      %v1451 = vpop.permute.xlu0 %1450
      %1454 = vrot.lane.b32.xlu0 %v1338, 57
      %v1455 = vpop.permute.xlu0 %1454
      %1456 = vrot.lane.b32.xlu0 %v1343, 57
      %v1457 = vpop.permute.xlu0 %1456
      %v1460 = vsel %vm1014, %v1449, %v1455
      %v1461 = vsel %vm1014, %v1451, %v1457
      %v1462 = vlaneseq
      %v1463 = vshrl.u32 %v1462, 7
      %v1464 = vsub.s32 6, %v1463
      %v1465 = vrot.slane %v1263, %v1464
      %v1466 = vmul.f32 %v1460, %v1465
      %v1467 = vmul.f32 %v1461, %v1465
      %1468 = vrot.lane.b32.xlu0 %v1338, 120
      %v1469 = vpop.permute.xlu0 %1468
      %1470 = vrot.lane.b32.xlu0 %v1343, 120
      %v1471 = vpop.permute.xlu0 %1470
      %1474 = vrot.lane.b32.xlu0 %v1338, 56
      %v1475 = vpop.permute.xlu0 %1474
      %1476 = vrot.lane.b32.xlu0 %v1343, 56
      %v1477 = vpop.permute.xlu0 %1476
      %v1480 = vsel %vm1027, %v1469, %v1475
      %v1481 = vsel %vm1027, %v1471, %v1477
      %v1482 = vlaneseq
      %v1483 = vshrl.u32 %v1482, 7
      %v1484 = vsub.s32 7, %v1483
      %v1485 = vrot.slane %v1263, %v1484
      %v1486 = vmul.f32 %v1480, %v1485
      %v1487 = vmul.f32 %v1481, %v1485
      %1488 = vrot.lane.b32.xlu0 %v1338, 119
      %v1489 = vpop.permute.xlu0 %1488
      %1490 = vrot.lane.b32.xlu0 %v1343, 119
      %v1491 = vpop.permute.xlu0 %1490
      %1494 = vrot.lane.b32.xlu0 %v1338, 55
      %v1495 = vpop.permute.xlu0 %1494
      %1496 = vrot.lane.b32.xlu0 %v1343, 55
      %v1497 = vpop.permute.xlu0 %1496
      %v1500 = vsel %vm1040, %v1489, %v1495
      %v1501 = vsel %vm1040, %v1491, %v1497
      %v1502 = vlaneseq
      %v1503 = vshrl.u32 %v1502, 7
      %v1504 = vsub.s32 0, %v1503
      %v1505 = vrot.slane %v1264, %v1504
      %v1506 = vmul.f32 %v1500, %v1505
      %v1507 = vmul.f32 %v1501, %v1505
      %1509 = vset.pattern.permute.xlu0 0
      %1510 = vperm.xlu0 %1509, %v1262
      %v1511 = vpop.permute.xlu0 %1510
      %v1514 = vsel %vm616, %v1261, 0
      %1516 = vmatprep.subr.mxu0 0.0
      %1517 = vmatpush1.msra.mxu0 %v1366
      %1518 = vmatprep.subr.mxu0 0.0
      %1519 = vmatpush1.msra.mxu0 %v1367
      %1520 = vmatprep.subr.mxu0 0.0
      %1521 = vmatpush1.msra.mxu0 %v1386
      %1522 = vmatprep.subr.mxu0 0.0
      %1523 = vmatpush1.msra.mxu0 %v1387
      %1524 = vmatprep.subr.mxu0 0.0
      %1525 = vmatpush1.msra.mxu0 %v1406
      %1526 = vmatprep.subr.mxu0 0.0
      %1527 = vmatpush1.msra.mxu0 %v1407
      %1528 = vmatprep.subr.mxu0 0.0
      %1529 = vmatpush1.msra.mxu0 %v1426
      %1530 = vmatprep.subr.mxu0 0.0
      %1531 = vmatpush1.msra.mxu0 %v1427
      %1532 = vmatprep.subr.mxu0 0.0
      %1533 = vmatpush1.msra.mxu0 %v1338
      %1534 = vmatprep.subr.mxu0 0.0
      %1535 = vmatpush1.msra.mxu0 %v1343
      %1536 = vmatprep.subr.mxu0 0.0
      %1537 = vmatpush1.msra.mxu0 %v1446
      %1538 = vmatprep.subr.mxu0 0.0
      %1539 = vmatpush1.msra.mxu0 %v1447
      %1540 = vmatprep.subr.mxu0 0.0
      %1541 = vmatpush1.msra.mxu0 %v1466
      %1542 = vmatprep.subr.mxu0 0.0
      %1543 = vmatpush1.msra.mxu0 %v1467
      %1544 = vmatprep.subr.mxu0 0.0
      %1545 = vmatpush1.msra.mxu0 %v1486
      %1546 = vmatprep.subr.mxu0 0.0
      %1547 = vmatpush1.msra.mxu0 %v1487
      %1548 = vmatprep.subr.mxu0 0.0
      %1549 = vmatpush1.msra.mxu0 %v1506
      %1550 = vmatprep.subr.mxu0 0.0
      %1551 = vmatpush1.msra.mxu0 %v1507
      %1552 = vmatprep.subr.mxu0 0.0
      %1553 = vmatpush1.msra.mxu0 0.0
      %1554 = vmatprep.subr.mxu0 0.0
      %1555 = vmatpush1.msra.mxu0 0.0
      %1556 = vmatprep.subr.mxu0 0.0
      %1557 = vmatpush1.msra.mxu0 0.0
      %1558 = vmatprep.subr.mxu0 0.0
      %1559 = vmatpush1.msra.mxu0 0.0
      %1560 = vmatprep.subr.mxu0 0.0
      %1561 = vmatpush1.msra.mxu0 0.0
      %1562 = vmatprep.subr.mxu0 0.0
      %1563 = vmatpush1.msra.mxu0 0.0
      %1564 = vmatprep.subr.mxu0 0.0
      %1565 = vmatpush1.msra.mxu0 0.0
      %1566 = vmatprep.subr.mxu0 0.0
      %1567 = vmatpush1.msra.mxu0 0.0
      %1568 = vmatprep.subr.mxu0 0.0
      %1569 = vmatpush1.msra.mxu0 0.0
      %1570 = vmatprep.subr.mxu0 0.0
      %1571 = vmatpush1.msra.mxu0 0.0
      %1572 = vmatprep.subr.mxu0 0.0
      %1573 = vmatpush1.msra.mxu0 0.0
      %1574 = vmatprep.subr.mxu0 0.0
      %1575 = vmatpush1.msra.mxu0 0.0
      %1576 = vmatprep.subr.mxu0 0.0
      %1577 = vmatpush1.msra.mxu0 0.0
      %1578 = vmatprep.subr.mxu0 0.0
      %1579 = vmatpush1.msra.mxu0 0.0
      %1580 = vmatprep.mubr.f32.mxu0 %v1514
      %1581 = vmatmul.mubr.f32.gmra.mrb[0].mxu0 %v1260
      %v1582 = vpop.f32.mrb[0].mxu0
      %v1583 = vadd.f32 %v1511, %v1582
      %v1584 = vpop.f32.mrb[0].mxu0
      %1585 = vdwg.mxu0
      %v1586 = vmax.f32 %v1583, 0.0
      %v1587 = vld [vmem:[%s13] sm:$0xff]
      %v1588 = vld [vmem:[%s13 + $0x8] sm:$0xff]
      %v1589 = vld [vmem:[%s13 + $0x10] sm:$0xff]
      %v1590 = vld [vmem:[%s13 + $0x18] sm:$0xff]
      %v1591 = vld [vmem:[%s13 + $0x20] sm:$0xff]
      %v1592 = vld [vmem:[%s13 + $0x28] sm:$0xff]
      %v1593 = vld [vmem:[%s13 + $0x30] sm:$0xff]
      %v1594 = vld [vmem:[%s13 + $0x38] sm:$0xff]
      %v1595 = vld [vmem:[%s13 + $0x40] sm:$0xff]
      %v1596 = vld [vmem:[%s13 + $0x48] sm:$0xff]
      %v1597 = vld [vmem:[%s13 + $0x50] sm:$0xff]
      %v1598 = vld [vmem:[%s13 + $0x58] sm:$0xff]
      %v1599 = vld [vmem:[%s13 + $0x60] sm:$0xff]
      %v1600 = vld [vmem:[%s13 + $0x68] sm:$0xff]
      %v1601 = vld [vmem:[%s13 + $0x70] sm:$0xff]
      %v1602 = vld [vmem:[%s13 + $0x78] sm:$0xff]
      %v1603 = vld [vmem:[%s14] sm:$0xff]
      %v1604 = vld [vmem:[%s15] sm:$0xff]
      %v1605 = vld [vmem:[%s16] sm:$0xff]
      %v1606 = vld [vmem:[%s16 + $0x8] sm:$0xff]
      %v1607 = vld [vmem:[%s16 + $0x10] sm:$0x1]
      %v1608 = vld [vmem:[%s16 + $0x18] sm:$0x1]
      %v1610 = vsel %vm1176, %v1586, 0
      %1612 = vmatprep.subr.mxu0 %v1588
      %1613 = vmatpush1.msra.mxu0 %v1587
      %1614 = vmatprep.subr.mxu0 %v1590
      %1615 = vmatpush1.msra.mxu0 %v1589
      %1616 = vmatprep.subr.mxu0 %v1592
      %1617 = vmatpush1.msra.mxu0 %v1591
      %1618 = vmatprep.subr.mxu0 %v1594
      %1619 = vmatpush1.msra.mxu0 %v1593
      %1620 = vmatprep.subr.mxu0 %v1596
      %1621 = vmatpush1.msra.mxu0 %v1595
      %1622 = vmatprep.subr.mxu0 %v1598
      %1623 = vmatpush1.msra.mxu0 %v1597
      %1624 = vmatprep.subr.mxu0 %v1600
      %1625 = vmatpush1.msra.mxu0 %v1599
      %1626 = vmatprep.subr.mxu0 %v1602
      %1627 = vmatpush1.msra.mxu0 %v1601
      %1628 = vmatprep.subr.mxu0 0.0
      %1629 = vmatpush1.msra.mxu0 0.0
      %1630 = vmatprep.subr.mxu0 0.0
      %1631 = vmatpush1.msra.mxu0 0.0
      %1632 = vmatprep.subr.mxu0 0.0
      %1633 = vmatpush1.msra.mxu0 0.0
      %1634 = vmatprep.subr.mxu0 0.0
      %1635 = vmatpush1.msra.mxu0 0.0
      %1636 = vmatprep.subr.mxu0 0.0
      %1637 = vmatpush1.msra.mxu0 0.0
      %1638 = vmatprep.subr.mxu0 0.0
      %1639 = vmatpush1.msra.mxu0 0.0
      %1640 = vmatprep.subr.mxu0 0.0
      %1641 = vmatpush1.msra.mxu0 0.0
      %1642 = vmatprep.subr.mxu0 0.0
      %1643 = vmatpush1.msra.mxu0 0.0
      %1644 = vmatprep.subr.mxu0 0.0
      %1645 = vmatpush1.msra.mxu0 0.0
      %1646 = vmatprep.subr.mxu0 0.0
      %1647 = vmatpush1.msra.mxu0 0.0
      %1648 = vmatprep.subr.mxu0 0.0
      %1649 = vmatpush1.msra.mxu0 0.0
      %1650 = vmatprep.subr.mxu0 0.0
      %1651 = vmatpush1.msra.mxu0 0.0
      %1652 = vmatprep.subr.mxu0 0.0
      %1653 = vmatpush1.msra.mxu0 0.0
      %1654 = vmatprep.subr.mxu0 0.0
      %1655 = vmatpush1.msra.mxu0 0.0
      %1656 = vmatprep.subr.mxu0 0.0
      %1657 = vmatpush1.msra.mxu0 0.0
      %1658 = vmatprep.subr.mxu0 0.0
      %1659 = vmatpush1.msra.mxu0 0.0
      %1660 = vmatprep.subr.mxu0 0.0
      %1661 = vmatpush1.msra.mxu0 0.0
      %1662 = vmatprep.subr.mxu0 0.0
      %1663 = vmatpush1.msra.mxu0 0.0
      %1664 = vmatprep.subr.mxu0 0.0
      %1665 = vmatpush1.msra.mxu0 0.0
      %1666 = vmatprep.subr.mxu0 0.0
      %1667 = vmatpush1.msra.mxu0 0.0
      %1668 = vmatprep.subr.mxu0 0.0
      %1669 = vmatpush1.msra.mxu0 0.0
      %1670 = vmatprep.subr.mxu0 0.0
      %1671 = vmatpush1.msra.mxu0 0.0
      %1672 = vmatprep.subr.mxu0 0.0
      %1673 = vmatpush1.msra.mxu0 0.0
      %1674 = vmatprep.subr.mxu0 0.0
      %1675 = vmatpush1.msra.mxu0 0.0
      %1676 = vmatprep.mubr.f32.mxu0 0.0
      %1677 = vmatmul.mubr.f32.gmra.mrb[0].mxu0 %v1610
      %v1678 = vpop.f32.mrb[0].mxu0
      %v1679 = vadd.f32 0.0, %v1678
      %v1680 = vpop.f32.mrb[0].mxu0
      %v1681 = vadd.f32 0.0, %v1680
      %1682 = vdwg.mxu0
      %1684 = vrot.lane.b32.xlu0 %v1681, 17
      %v1685 = vpop.permute.xlu0 %1684
      %1688 = vrot.lane.b32.xlu0 %v1679, 17
      %v1689 = vpop.permute.xlu0 %1688
      %v1690 = vsel %vm596, %v1689, %v1685
      %v1693 = vsel %vm596, %v1685, %v1689
      %v1694 = vlaneseq
      %v1695 = vshrl.u32 %v1694, 7
      %v1696 = vsub.s32 0, %v1695
      %v1697 = vrot.slane %v1605, %v1696
      %v1698 = vlaneseq
      %v1699 = vshrl.u32 %v1698, 7
      %v1700 = vsub.s32 0, %v1699
      %v1701 = vrot.slane %v1606, %v1700
      %v1702 = vmul.f32 %v1693, %v1697
      %v1703 = vmul.f32 %v1690, %v1701
      %1704 = vrot.lane.b32.xlu0 %v1681, 16
      %v1705 = vpop.permute.xlu0 %1704
      %1707 = vrot.lane.b32.xlu0 %v1679, 16
      %v1708 = vpop.permute.xlu0 %1707
      %v1709 = vsel %vm616, %v1708, %v1705
      %v1712 = vsel %vm616, %v1705, %v1708
      %v1713 = vlaneseq
      %v1714 = vshrl.u32 %v1713, 7
      %v1715 = vsub.s32 1, %v1714
      %v1716 = vrot.slane %v1605, %v1715
      %v1717 = vlaneseq
      %v1718 = vshrl.u32 %v1717, 7
      %v1719 = vsub.s32 1, %v1718
      %v1720 = vrot.slane %v1606, %v1719
      %v1721 = vmul.f32 %v1712, %v1716
      %v1722 = vmul.f32 %v1709, %v1720
      %1723 = vrot.lane.b32.xlu0 %v1681, 15
      %v1724 = vpop.permute.xlu0 %1723
      %1726 = vrot.lane.b32.xlu0 %v1679, 15
      %v1727 = vpop.permute.xlu0 %1726
      %v1728 = vsel %vm636, %v1727, %v1724
      %v1731 = vsel %vm636, %v1724, %v1727
      %v1732 = vlaneseq
      %v1733 = vshrl.u32 %v1732, 7
      %v1734 = vsub.s32 2, %v1733
      %v1735 = vrot.slane %v1605, %v1734
      %v1736 = vlaneseq
      %v1737 = vshrl.u32 %v1736, 7
      %v1738 = vsub.s32 2, %v1737
      %v1739 = vrot.slane %v1606, %v1738
      %v1740 = vmul.f32 %v1731, %v1735
      %v1741 = vmul.f32 %v1728, %v1739
      %1742 = vrot.lane.b32.xlu0 %v1681, 1
      %v1743 = vpop.permute.xlu0 %1742
      %1745 = vrot.lane.b32.xlu0 %v1679, 1
      %v1746 = vpop.permute.xlu0 %1745
      %v1747 = vsel %vm656, %v1746, %v1743
      %v1750 = vsel %vm656, %v1743, %v1746
      %v1751 = vlaneseq
      %v1752 = vshrl.u32 %v1751, 7
      %v1753 = vsub.s32 3, %v1752
      %v1754 = vrot.slane %v1605, %v1753
      %v1755 = vlaneseq
      %v1756 = vshrl.u32 %v1755, 7
      %v1757 = vsub.s32 3, %v1756
      %v1758 = vrot.slane %v1606, %v1757
      %v1759 = vmul.f32 %v1750, %v1754
      %v1760 = vmul.f32 %v1747, %v1758
      %1761 = vrot.lane.b32.xlu0 %v1679, 127
      %v1762 = vpop.permute.xlu0 %1761
      %1763 = vrot.lane.b32.xlu0 %v1681, 127
      %v1764 = vpop.permute.xlu0 %1763
      %v1765 = vsel %vm675, %v1762, %v1764
      %v1769 = vsel %vm675, %v1764, %v1762
      %v1770 = vlaneseq
      %v1771 = vshrl.u32 %v1770, 7
      %v1772 = vsub.s32 5, %v1771
      %v1773 = vrot.slane %v1605, %v1772
      %v1774 = vlaneseq
      %v1775 = vshrl.u32 %v1774, 7
      %v1776 = vsub.s32 5, %v1775
      %v1777 = vrot.slane %v1606, %v1776
      %v1778 = vmul.f32 %v1765, %v1773
      %v1779 = vmul.f32 %v1769, %v1777
      %1780 = vrot.lane.b32.xlu0 %v1679, 113
      %v1781 = vpop.permute.xlu0 %1780
      %1782 = vrot.lane.b32.xlu0 %v1681, 113
      %v1783 = vpop.permute.xlu0 %1782
      %v1784 = vsel %vm695, %v1781, %v1783
      %v1788 = vsel %vm695, %v1783, %v1781
      %v1789 = vlaneseq
      %v1790 = vshrl.u32 %v1789, 7
      %v1791 = vsub.s32 6, %v1790
      %v1792 = vrot.slane %v1605, %v1791
      %v1793 = vlaneseq
      %v1794 = vshrl.u32 %v1793, 7
      %v1795 = vsub.s32 6, %v1794
      %v1796 = vrot.slane %v1606, %v1795
      %v1797 = vmul.f32 %v1784, %v1792
      %v1798 = vmul.f32 %v1788, %v1796
      %1799 = vrot.lane.b32.xlu0 %v1679, 112
      %v1800 = vpop.permute.xlu0 %1799
      %1801 = vrot.lane.b32.xlu0 %v1681, 112
      %v1802 = vpop.permute.xlu0 %1801
      %v1803 = vsel %vm715, %v1800, %v1802
      %v1807 = vsel %vm715, %v1802, %v1800
      %v1808 = vlaneseq
      %v1809 = vshrl.u32 %v1808, 7
      %v1810 = vsub.s32 7, %v1809
      %v1811 = vrot.slane %v1605, %v1810
      %v1812 = vlaneseq
      %v1813 = vshrl.u32 %v1812, 7
      %v1814 = vsub.s32 7, %v1813
      %v1815 = vrot.slane %v1606, %v1814
      %v1816 = vmul.f32 %v1803, %v1811
      %v1817 = vmul.f32 %v1807, %v1815
      %1818 = vrot.lane.b32.xlu0 %v1679, 111
      %v1819 = vpop.permute.xlu0 %1818
      %1820 = vrot.lane.b32.xlu0 %v1681, 111
      %v1821 = vpop.permute.xlu0 %1820
      %v1822 = vsel %vm735, %v1819, %v1821
      %v1826 = vsel %vm735, %v1821, %v1819
      %v1827 = vlaneseq
      %v1828 = vshrl.u32 %v1827, 7
      %v1829 = vsub.s32 0, %v1828
      %v1830 = vrot.slane %v1607, %v1829
      %v1831 = vlaneseq
      %v1832 = vshrl.u32 %v1831, 7
      %v1833 = vsub.s32 0, %v1832
      %v1834 = vrot.slane %v1608, %v1833
      %v1835 = vmul.f32 %v1822, %v1830
      %v1836 = vmul.f32 %v1826, %v1834
      %1838 = vset.pattern.permute.xlu0 0
      %1839 = vperm.xlu0 %1838, %v1604
      %v1840 = vpop.permute.xlu0 %1839
      %v1843 = vsel %vm756, %v1603, 0
      %1845 = vmatprep.subr.mxu0 %v1703
      %1846 = vmatpush1.msra.mxu0 %v1702
      %1847 = vmatprep.subr.mxu0 %v1722
      %1848 = vmatpush1.msra.mxu0 %v1721
      %1849 = vmatprep.subr.mxu0 %v1741
      %1850 = vmatpush1.msra.mxu0 %v1740
      %1851 = vmatprep.subr.mxu0 %v1760
      %1852 = vmatpush1.msra.mxu0 %v1759
      %1853 = vmatprep.subr.mxu0 %v1681
      %1854 = vmatpush1.msra.mxu0 %v1679
      %1855 = vmatprep.subr.mxu0 %v1779
      %1856 = vmatpush1.msra.mxu0 %v1778
      %1857 = vmatprep.subr.mxu0 %v1798
      %1858 = vmatpush1.msra.mxu0 %v1797
      %1859 = vmatprep.subr.mxu0 %v1817
      %1860 = vmatpush1.msra.mxu0 %v1816
      %1861 = vmatprep.subr.mxu0 %v1836
      %1862 = vmatpush1.msra.mxu0 %v1835
      %1863 = vmatprep.subr.mxu0 0.0
      %1864 = vmatpush1.msra.mxu0 0.0
      %1865 = vmatprep.subr.mxu0 0.0
      %1866 = vmatpush1.msra.mxu0 0.0
      %1867 = vmatprep.subr.mxu0 0.0
      %1868 = vmatpush1.msra.mxu0 0.0
      %1869 = vmatprep.subr.mxu0 0.0
      %1870 = vmatpush1.msra.mxu0 0.0
      %1871 = vmatprep.subr.mxu0 0.0
      %1872 = vmatpush1.msra.mxu0 0.0
      %1873 = vmatprep.subr.mxu0 0.0
      %1874 = vmatpush1.msra.mxu0 0.0
      %1875 = vmatprep.subr.mxu0 0.0
      %1876 = vmatpush1.msra.mxu0 0.0
      %1877 = vmatprep.subr.mxu0 0.0
      %1878 = vmatpush1.msra.mxu0 0.0
      %1879 = vmatprep.subr.mxu0 0.0
      %1880 = vmatpush1.msra.mxu0 0.0
      %1881 = vmatprep.subr.mxu0 0.0
      %1882 = vmatpush1.msra.mxu0 0.0
      %1883 = vmatprep.subr.mxu0 0.0
      %1884 = vmatpush1.msra.mxu0 0.0
      %1885 = vmatprep.subr.mxu0 0.0
      %1886 = vmatpush1.msra.mxu0 0.0
      %1887 = vmatprep.subr.mxu0 0.0
      %1888 = vmatpush1.msra.mxu0 0.0
      %1889 = vmatprep.subr.mxu0 0.0
      %1890 = vmatpush1.msra.mxu0 0.0
      %1891 = vmatprep.subr.mxu0 0.0
      %1892 = vmatpush1.msra.mxu0 0.0
      %1893 = vmatprep.subr.mxu0 0.0
      %1894 = vmatpush1.msra.mxu0 0.0
      %1895 = vmatprep.subr.mxu0 0.0
      %1896 = vmatpush1.msra.mxu0 0.0
      %1897 = vmatprep.subr.mxu0 0.0
      %1898 = vmatpush1.msra.mxu0 0.0
      %1899 = vmatprep.subr.mxu0 0.0
      %1900 = vmatpush1.msra.mxu0 0.0
      %1901 = vmatprep.subr.mxu0 0.0
      %1902 = vmatpush1.msra.mxu0 0.0
      %1903 = vmatprep.subr.mxu0 0.0
      %1904 = vmatpush1.msra.mxu0 0.0
      %1905 = vmatprep.subr.mxu0 0.0
      %1906 = vmatpush1.msra.mxu0 0.0
      %1907 = vmatprep.subr.mxu0 0.0
      %1908 = vmatpush1.msra.mxu0 0.0
      %1909 = vmatprep.mubr.f32.mxu0 0.0
      %1910 = vmatmul.mubr.f32.gmra.mrb[0].mxu0 %v1843
      %v1911 = vpop.f32.mrb[0].mxu0
      %v1912 = vadd.f32 %v1840, %v1911
      %v1913 = vpop.f32.mrb[0].mxu0
      %v1914 = vadd.f32 %v1840, %v1913
      %1915 = vdwg.mxu0
      %v1916 = vmul.f32 %v1912, 0.5
      %v1917 = vmul.f32 %v1914, 0.5
      %v1918 = vtanh.pop %v1916
      %v1919 = vtanh.pop %v1917
      %v1920 = vadd.f32 %v1918, 1.0
      %v1921 = vadd.f32 %v1919, 1.0
      %v1922 = vmul.f32 %v1920, 0.5
      %v1923 = vmul.f32 %v1921, 0.5
      %v1926 = vcombine.low %v1922, %v1923
      %1928 = vst [vmem:[%s548] sm:$0xff] %v1926
      %p1929 = scmp.lt.s32.totalorder %s28, 1
      %s1930 = scalar_select %p1929, %s28, 1
      %s1931 = smul.addr %s1930, 2
      %s1932 = smul.addr %s1931, 4
      %s1933 = scalar_lea.vmem %s17, %s1932
      // Predicated region
      $region89: #{conv_autoencoder_forward.1} parent=87 // pred_check
        %p1934 = pneg %p408
      $region90: #{conv_autoencoder_forward.1} parent=87 // pred_check_branch
        %1936 = sbr.rel (%p1934) target = $region92
      $region91: #{conv_autoencoder_forward.1} parent=87 // pred_region
        _
      $region92: #{conv_autoencoder_forward.1} parent=87 // pred_fallthru
        _
    $region88: #{conv_autoencoder_forward.1} parent=5 // pred_fallthru
      _
    %p1937 = scmp.le.s32.totalorder 2, %s23
    // Predicated region
    $region93: #{conv_autoencoder_forward.1} parent=5 // pred_check
      %p1938 = pneg %p1937
    $region94: #{conv_autoencoder_forward.1} parent=5 // pred_check_branch
      %1940 = sbr.rel (%p1938) target = $region96
    $region95: #{conv_autoencoder_forward.1} parent=5 // pred_region
      %s1941 = ssub.s32 %s23, 2
      // Predicated region
      $region97: #{conv_autoencoder_forward.1} parent=95 // pred_check
        %p1942 = pneg %p414
      $region98: #{conv_autoencoder_forward.1} parent=95 // pred_check_branch
        %1944 = sbr.rel (%p1942) target = $region100
      $region99: #{conv_autoencoder_forward.1} parent=95 // pred_region
        %p1945 = scmp.lt.s32.totalorder %s29, 1
        %s1946 = scalar_select %p1945, %s29, 1
        %s1947 = smul.addr %s1946, 2
        %s1948 = smul.addr %s1947, 4
        %s1949 = scalar_lea.vmem %s17, %s1948
      $region100: #{conv_autoencoder_forward.1} parent=95 // pred_fallthru
        _
    $region96: #{conv_autoencoder_forward.1} parent=5 // pred_fallthru
      _
  $region6: #{conv_autoencoder_forward.1} parent=0 // loop_footer
    %s27 = sadd.s32 1, %s23
  $region7: #{conv_autoencoder_forward.1} parent=0 // loop_footer_branch
    %22 = sbr.rel target = $region3
  $region8: #{conv_autoencoder_forward.1} parent=0 // loop_exit
    _

</llo_original>
